<compile_context>
chip_gen: v6e
topology: v6e:2x2x1
jax: 0.10.0
libtpu: 0.0.40
codegen_flags: <defaults>
</compile_context>

<pallas_src>
import jax
import jax.numpy as jnp
import numpy as np
from jax.experimental import pallas as pl
from jax.experimental.pallas import tpu as pltpu

LATENT_DIM = 100   # Word2Wave.init_latents(latent_dim=100)
VOCAB = 64         # TODO(synk): real COALA tag vocabulary is 1000 tags
EMBED_DIM = 32     # TODO(synk): real COALA embedding_d dimension is 1152
MODEL_SIZE = 32    # WaveGANGenerator(model_size=32), scaled-down stack below
N_TAG_ROWS = 8     # fixed tag-row count (prompt words padded/truncated to 8)


# ----------------------------------------------------------------------------
# The single fused Pallas kernel
# ----------------------------------------------------------------------------
def _word2wave_kernel(dyn_ref, wwide_ref, wmain_ref, bias_ref, out_ref, scr_ref):
    f32 = jnp.float32
    bf16 = jnp.bfloat16
    relu = lambda x: jnp.maximum(x, 0.0)

    def mm(x, w):
        # bf16 MXU matmul, f32 accumulation
        return jnp.dot(x.astype(bf16), w, preferred_element_type=f32)

    # ------------------ generator(self.latents) ------------------
    z = dyn_ref[0:1, :]                                                  # (1,128)
    h_fc = relu(mm(z, wwide_ref[0:128, :]) + bias_ref[0:1, :])           # (1,512)

    # The WaveGAN (1,512)->(16,32) .view() is folded into the up1 matmul:
    # broadcast the row to 16 sublanes, keep only the 32-column block that
    # belongs to each row (iota mask), multiply by the 16x-tiled up1 weight.
    row = jax.lax.broadcasted_iota(jnp.int32, (16, 512), 0)
    col = jax.lax.broadcasted_iota(jnp.int32, (16, 512), 1)
    d = col - row * 32
    g0sel = jnp.where((d >= 0) & (d < 32),
                      jnp.broadcast_to(h_fc, (16, 512)), 0.0)            # (16,512)

    u1 = relu(mm(g0sel, wmain_ref[0:512, 0:64]) + bias_ref[1:2, 0:64])   # (16,64)
    u2 = relu(mm(u1, wmain_ref[512:576, :]) + bias_ref[2:3, 0:128])      # (16,128)
    u3 = jnp.tanh(mm(u2, wmain_ref[576:704, 0:64]) + bias_ref[3:4, 0:64])  # (16,64)
    # audio[64*i + f] == u3[i, f]  ->  host reshape(-1) gives the waveform.

    # ------------------ encode_text ------------------
    tags = dyn_ref[8:16, :]                                              # (8,128)
    e1 = relu(mm(tags, wmain_ref[1216:1344, :]) + bias_ref[9:10, 0:128])  # (8,128)
    emb_d = mm(e1, wmain_ref[1344:1472, 0:32]) + bias_ref[10:11, 0:32]    # (8,32)
    # masked mean: a real one-hot row sums to 1, a padding row sums to 0
    row_valid = jnp.sum(tags, axis=1, keepdims=True)                     # (8,1)
    n_words = jnp.sum(row_valid, axis=0, keepdims=True)                  # (1,1)
    text_emb = jnp.sum(emb_d * row_valid, axis=0, keepdims=True) / n_words  # (1,32)

    # ------------------ encode_audio ------------------
    # TODO(synk): real preprocess_audio computes a mel spectrogram; here the
    # waveform grid is scaled + clamped (MinMaxScaler surrogate).
    scaled = jnp.clip(u3 * bias_ref[4:5, 0:64] + bias_ref[5:6, 0:64], 0.0, 1.0)

    # conv1 (3x3, stride 2, pad 1, 1->8 ch): ONE matmul against [A12|A0];
    # the di=0 row shift is applied to the result by linearity (roll + mask).
    h1pre = mm(scaled, wwide_ref[128:192, 0:256])                        # (16,256)
    p12 = h1pre[:, 0:128]
    p0 = h1pre[:, 128:256]
    p0s = pltpu.roll(p0, shift=1, axis=0)                                # row i <- p0[i-1]
    row16 = jax.lax.broadcasted_iota(jnp.int32, (16, 128), 0)
    p0s = jnp.where(row16 == 0, 0.0, p0s)                                # zero pad row
    h1 = relu(p12 + p0s + bias_ref[6:7, 0:128])                          # (16,128)

    # conv2 (3x3, stride 2, pad 1, 8->16 ch): bulk-store h1 into a zero-topped
    # scratch, take the three stride-2 row taps, ONE matmul against [N0;N1;N2].
    scr_ref[0:1, :] = jnp.zeros((1, 128), f32)
    scr_ref[1:17, :] = h1
    lhs = jnp.concatenate(
        [scr_ref[pl.ds(0, 8, stride=2), :],    # h1[2t-1] (zero row at t=0)
         scr_ref[pl.ds(1, 8, stride=2), :],    # h1[2t]
         scr_ref[pl.ds(2, 8, stride=2), :]],   # h1[2t+1]
        axis=1)                                                          # (8,384)
    h2 = relu(mm(lhs, wmain_ref[704:1088, :]) + bias_ref[7:8, 0:128])    # (8,128)

    # Global mean-pool is folded into wenc (tiled / 64): just a row-sum here.
    pooled = jnp.sum(h2, axis=0, keepdims=True)                          # (1,128)
    audio_emb = mm(pooled, wmain_ref[1088:1216, 0:32]) + bias_ref[8:9, 0:32]  # (1,32)

    # ------------------ coala_loss ------------------
    eps = 1e-8
    a = audio_emb * jax.lax.rsqrt(
        jnp.sum(audio_emb * audio_emb, axis=-1, keepdims=True) + eps)
    t = text_emb * jax.lax.rsqrt(
        jnp.sum(text_emb * text_emb, axis=-1, keepdims=True) + eps)
    cos = jnp.sum(a * t, axis=-1, keepdims=True)                         # (1,1)
    loss = (1.0 - cos) * 0.5

    # single packed output: rows 0:16 = waveform grid, rows 16:24 = loss
    out_ref[0:16, :] = u3
    out_ref[16:24, :] = jnp.broadcast_to(loss, (8, 64))


# ----------------------------------------------------------------------------
# Host-side construction of the structured (layout-folded) weights
# ----------------------------------------------------------------------------
def _build_conv1_mats(K1):
    """K1: (3, 3, 8) conv kernel -> A0, A12 of shape (64, 128)."""
    A12 = np.zeros((64, 128), np.float32)
    A0 = np.zeros((64, 128), np.float32)
    for oj in range(16):
        for dj in range(3):
            wcol = 2 * oj + dj - 1
            if not 0 <= wcol < 32:          # zero padding -> omitted
                continue
            for co in range(8):
                n = 8 * oj + co
                A12[wcol, n] = K1[1, dj, co]        # di=1: spec row 2*oi
                A12[32 + wcol, n] = K1[2, dj, co]   # di=2: spec row 2*oi+1
                A0[32 + wcol, n] = K1[0, dj, co]    # di=0: spec row 2*oi-1 (shifted)
    return A0, A12


def _build_conv2_mats(K2):
    """K2: (3, 3, 8, 16) conv kernel -> N0, N1, N2 of shape (128, 128)."""
    Ns = [np.zeros((128, 128), np.float32) for _ in range(3)]
    for oj2 in range(8):
        for dj in range(3):
            j = 2 * oj2 + dj - 1
            if not 0 <= j < 16:             # zero padding -> omitted
                continue
            for c in range(8):
                for o in range(16):
                    for di in range(3):
                        Ns[di][8 * j + c, 16 * oj2 + o] = K2[di, dj, c, o]
    return Ns  # N0, N1, N2


def init_params(key):
    keys = jax.random.split(key, 12)

    def w(k, shape, scale=0.1):
        return np.asarray(scale * jax.random.normal(k, shape), np.float32)

    # ---- logical parameters (mirroring the torch module structure) ----
    W_fc = w(keys[0], (LATENT_DIM, 16 * MODEL_SIZE))      # (100, 512)
    b_fc = np.zeros((512,), np.float32)
    W_up1 = w(keys[1], (32, 64)); b_up1 = np.zeros((64,), np.float32)
    W_up2 = w(keys[2], (16, 32)); b_up2 = np.zeros((32,), np.float32)
    W_up3 = w(keys[3], (8, 4));   b_up3 = np.zeros((4,), np.float32)
    Wt1 = w(keys[4], (VOCAB, 128)); bt1 = np.zeros((128,), np.float32)
    Wt2 = w(keys[5], (128, EMBED_DIM)); bt2 = np.zeros((EMBED_DIM,), np.float32)
    K1 = w(keys[6], (3, 3, 8));      b1 = np.zeros((8,), np.float32)
    K2 = w(keys[7], (3, 3, 8, 16));  b2 = np.zeros((16,), np.float32)
    W_enc = w(keys[8], (16, EMBED_DIM)); b_enc = np.zeros((EMBED_DIM,), np.float32)
    scale32 = np.full((32,), 0.5, np.float32)   # MinMaxScaler scale_ surrogate
    min32 = np.full((32,), 0.25, np.float32)    # MinMaxScaler min_ surrogate

    # ---- layout-folded weights ----
    W_fc_p = np.zeros((128, 512), np.float32)             # pad K: 100 -> 128
    W_fc_p[:LATENT_DIM, :] = W_fc
    W_up1_fold = np.tile(W_up1, (16, 1))                  # (512,64) fc-view fold
    W2B = np.kron(np.eye(4, dtype=np.float32), W_up2)     # (64, 128)
    W3B = np.kron(np.eye(16, dtype=np.float32), W_up3)    # (128, 64)
    A0, A12 = _build_conv1_mats(K1)
    W1cat = np.concatenate([A12, A0], axis=1)             # (64, 256) merged conv1
    N0, N1, N2 = _build_conv2_mats(K2)
    N_stack = np.concatenate([N0, N1, N2], axis=0)        # (384, 128) merged conv2
    W_enc_pool = np.tile(W_enc, (8, 1)) / 64.0            # mean-pool folded in
    Wt1p = np.zeros((128, 128), np.float32)               # pad K: 64 -> 128
    Wt1p[:VOCAB, :] = Wt1

    # ---- bf16 weight slabs (2 DMAs) ----
    wwide = np.zeros((192, 512), np.float32)
    wwide[0:128, :] = W_fc_p
    wwide[128:192, 0:256] = W1cat

    wmain = np.zeros((1472, 128), np.float32)
    wmain[0:512, 0:64] = W_up1_fold
    wmain[512:576, :] = W2B
    wmain[576:704, 0:64] = W3B
    wmain[704:1088, :] = N_stack
    wmain[1088:1216, 0:32] = W_enc_pool
    wmain[1216:1344, :] = Wt1p
    wmain[1344:1472, 0:32] = Wt2

    # ---- f32 bias / scale slab (1 DMA) ----
    bias = np.zeros((16, 512), np.float32)
    bias[0, :] = b_fc
    bias[1, 0:64] = b_up1
    bias[2, 0:128] = np.tile(b_up2, 4)
    bias[3, 0:64] = np.tile(b_up3, 16)
    bias[4, 0:64] = np.concatenate([scale32, scale32])
    bias[5, 0:64] = np.concatenate([min32, min32])
    bias[6, 0:128] = np.tile(b1, 16)
    bias[7, 0:128] = np.tile(b2, 8)
    bias[8, 0:32] = b_enc
    bias[9, 0:128] = bt1
    bias[10, 0:32] = bt2

    params = {
        "wwide": jnp.asarray(wwide, jnp.bfloat16),
        "wmain": jnp.asarray(wmain, jnp.bfloat16),
        "bias": jnp.asarray(bias, jnp.float32),
    }
    latents = jax.random.normal(keys[9], (1, LATENT_DIM)).astype(jnp.float32)
    return params, latents


# ----------------------------------------------------------------------------
# Forward pass: one fused pallas_call (4 input DMAs, 1 output DMA)
# ----------------------------------------------------------------------------
def word2wave_forward(params, latents, tag_rows):
    # dynamic inputs packed into one f32 (16,128) slab
    dyn = jnp.zeros((16, 128), jnp.float32)
    dyn = dyn.at[0, :LATENT_DIM].set(latents[0])
    dyn = dyn.at[8:16, :].set(tag_rows)

    out = pl.pallas_call(
        _word2wave_kernel,
        out_shape=jax.ShapeDtypeStruct((24, 64), jnp.float32),
        scratch_shapes=[
            pltpu.VMEM((24, 128), jnp.float32),   # zero-topped conv2 row-tap buffer
        ],
    )(dyn, params["wwide"], params["wmain"], params["bias"])

    audio = out[:16].reshape(-1)   # (1024,) row-major == waveform order
    loss = out[16, 0:1]            # (1,)    cosine-distance loss
    return audio, loss


if __name__ == "__main__":
    key = jax.random.PRNGKey(0)
    params, latents = init_params(key)

    # tokenize_text: keep words found in the (synthetic) tag dictionary,
    # padded to a fixed 8 rows so the kernel never recompiles per prompt.
    tag2id = {f"word{i}": i for i in range(VOCAB)}
    text_prompt = "word3 word17 word42 notatag"
    word_ids = [tag2id[w] for w in text_prompt.split(" ") if w in tag2id]
    tag_np = np.zeros((N_TAG_ROWS, 128), np.float32)
    for idx, wid in enumerate(word_ids[:N_TAG_ROWS]):
        tag_np[idx, wid] = 1.0
    tag_rows = jnp.asarray(tag_np)

    audio, loss = jax.jit(word2wave_forward)(params, latents, tag_rows)
    jax.block_until_ready((audio, loss))
    assert audio.shape == (1024,) and loss.shape == (1,)
    assert bool(jnp.isfinite(loss[0]))
    print("KERNEL_OK")
</pallas_src>

<mosaic_0001>
module attributes {stable_mosaic.version = 11 : i64} {
  func.func @_word2wave_kernel(%arg0: memref<16x128xf32, #tpu.memory_space<vmem>>, %arg1: memref<192x512xbf16, #tpu.memory_space<vmem>>, %arg2: memref<1472x128xbf16, #tpu.memory_space<vmem>>, %arg3: memref<16x512xf32, #tpu.memory_space<vmem>>, %arg4: memref<24x64xf32, #tpu.memory_space<vmem>>, %arg5: memref<24x128xf32, #tpu.memory_space<vmem>>) attributes {dimension_semantics = [], scalar_prefetch = 0 : i64, scratch_operands = 1 : i64, tpu.core_type = #tpu.core_type<tc>} {
    %c0 = arith.constant 0 : index
    %c0_0 = arith.constant 0 : index
    %0 = vector.load %arg0[%c0, %c0_0] : memref<16x128xf32, #tpu.memory_space<vmem>>, vector<1x128xf32>
    %c0_1 = arith.constant 0 : index
    %c0_2 = arith.constant 0 : index
    %1 = vector.load %arg1[%c0_1, %c0_2] : memref<192x512xbf16, #tpu.memory_space<vmem>>, vector<128x512xbf16>
    %2 = arith.truncf %0 : vector<1x128xf32> to vector<1x128xbf16>
    %cst = arith.constant dense<0.000000e+00> : vector<1x512xf32>
    %3 = tpu.matmul %2, %1, %cst {dimension_numbers = #tpu.dot_dimension_numbers<[1], [0], [0], [1], [0, 0, 1, 1], [], []>} : vector<1x128xbf16>, vector<128x512xbf16>, vector<1x512xf32> -> vector<1x512xf32>
    %c0_3 = arith.constant 0 : index
    %c0_4 = arith.constant 0 : index
    %4 = vector.load %arg3[%c0_3, %c0_4] : memref<16x512xf32, #tpu.memory_space<vmem>>, vector<1x512xf32>
    %5 = arith.addf %3, %4 : vector<1x512xf32>
    %cst_5 = arith.constant 0.000000e+00 : f32
    %6 = vector.broadcast %cst_5 : f32 to vector<1x512xf32>
    %7 = arith.maximumf %5, %6 : vector<1x512xf32>
    %8 = tpu.iota {dimensions = array<i32: 0>} : vector<16x512xi32>
    %9 = tpu.iota {dimensions = array<i32: 1>} : vector<16x512xi32>
    %c32_i32 = arith.constant 32 : i32
    %10 = vector.broadcast %c32_i32 : i32 to vector<16x512xi32>
    %11 = arith.muli %8, %10 : vector<16x512xi32>
    %12 = arith.subi %9, %11 : vector<16x512xi32>
    %c0_i32 = arith.constant 0 : i32
    %13 = vector.broadcast %c0_i32 : i32 to vector<16x512xi32>
    %14 = arith.cmpi sge, %12, %13 : vector<16x512xi32>
    %c32_i32_6 = arith.constant 32 : i32
    %15 = vector.broadcast %c32_i32_6 : i32 to vector<16x512xi32>
    %16 = arith.cmpi slt, %12, %15 : vector<16x512xi32>
    %17 = arith.andi %14, %16 : vector<16x512xi1>
    %18 = vector.shape_cast %7 : vector<1x512xf32> to vector<1x512xf32>
    %19 = vector.broadcast %18 : vector<1x512xf32> to vector<16x512xf32>
    %cst_7 = arith.constant 0.000000e+00 : f32
    %20 = vector.broadcast %cst_7 : f32 to vector<16x512xf32>
    %21 = arith.select %17, %19, %20 : vector<16x512xi1>, vector<16x512xf32>
    %c0_8 = arith.constant 0 : index
    %c0_9 = arith.constant 0 : index
    %22 = vector.load %arg2[%c0_8, %c0_9] : memref<1472x128xbf16, #tpu.memory_space<vmem>>, vector<512x64xbf16>
    %23 = arith.truncf %21 : vector<16x512xf32> to vector<16x512xbf16>
    %cst_10 = arith.constant dense<0.000000e+00> : vector<16x64xf32>
    %24 = tpu.matmul %23, %22, %cst_10 {dimension_numbers = #tpu.dot_dimension_numbers<[1], [0], [0], [1], [0, 0, 1, 1], [], []>} : vector<16x512xbf16>, vector<512x64xbf16>, vector<16x64xf32> -> vector<16x64xf32>
    %c1 = arith.constant 1 : index
    %c0_11 = arith.constant 0 : index
    %25 = vector.load %arg3[%c1, %c0_11] : memref<16x512xf32, #tpu.memory_space<vmem>>, vector<1x64xf32>
    %26 = vector.broadcast %25 : vector<1x64xf32> to vector<16x64xf32>
    %27 = arith.addf %24, %26 : vector<16x64xf32>
    %cst_12 = arith.constant 0.000000e+00 : f32
    %28 = vector.broadcast %cst_12 : f32 to vector<16x64xf32>
    %29 = arith.maximumf %27, %28 : vector<16x64xf32>
    %c512 = arith.constant 512 : index
    %c0_13 = arith.constant 0 : index
    %30 = vector.load %arg2[%c512, %c0_13] : memref<1472x128xbf16, #tpu.memory_space<vmem>>, vector<64x128xbf16>
    %31 = arith.truncf %29 : vector<16x64xf32> to vector<16x64xbf16>
    %cst_14 = arith.constant dense<0.000000e+00> : vector<16x128xf32>
    %32 = tpu.matmul %31, %30, %cst_14 {dimension_numbers = #tpu.dot_dimension_numbers<[1], [0], [0], [1], [0, 0, 1, 1], [], []>} : vector<16x64xbf16>, vector<64x128xbf16>, vector<16x128xf32> -> vector<16x128xf32>
    %c2 = arith.constant 2 : index
    %c0_15 = arith.constant 0 : index
    %33 = vector.load %arg3[%c2, %c0_15] : memref<16x512xf32, #tpu.memory_space<vmem>>, vector<1x128xf32>
    %34 = vector.broadcast %33 : vector<1x128xf32> to vector<16x128xf32>
    %35 = arith.addf %32, %34 : vector<16x128xf32>
    %cst_16 = arith.constant 0.000000e+00 : f32
    %36 = vector.broadcast %cst_16 : f32 to vector<16x128xf32>
    %37 = arith.maximumf %35, %36 : vector<16x128xf32>
    %c576 = arith.constant 576 : index
    %c0_17 = arith.constant 0 : index
    %38 = vector.load %arg2[%c576, %c0_17] : memref<1472x128xbf16, #tpu.memory_space<vmem>>, vector<128x64xbf16>
    %39 = arith.truncf %37 : vector<16x128xf32> to vector<16x128xbf16>
    %cst_18 = arith.constant dense<0.000000e+00> : vector<16x64xf32>
    %40 = tpu.matmul %39, %38, %cst_18 {dimension_numbers = #tpu.dot_dimension_numbers<[1], [0], [0], [1], [0, 0, 1, 1], [], []>} : vector<16x128xbf16>, vector<128x64xbf16>, vector<16x64xf32> -> vector<16x64xf32>
    %c3 = arith.constant 3 : index
    %c0_19 = arith.constant 0 : index
    %41 = vector.load %arg3[%c3, %c0_19] : memref<16x512xf32, #tpu.memory_space<vmem>>, vector<1x64xf32>
    %42 = vector.broadcast %41 : vector<1x64xf32> to vector<16x64xf32>
    %43 = arith.addf %40, %42 : vector<16x64xf32>
    %44 = math.tanh %43 : vector<16x64xf32>
    %c8 = arith.constant 8 : index
    %c0_20 = arith.constant 0 : index
    %45 = vector.load %arg0[%c8, %c0_20] : memref<16x128xf32, #tpu.memory_space<vmem>>, vector<8x128xf32>
    %c1216 = arith.constant 1216 : index
    %c0_21 = arith.constant 0 : index
    %46 = vector.load %arg2[%c1216, %c0_21] : memref<1472x128xbf16, #tpu.memory_space<vmem>>, vector<128x128xbf16>
    %47 = arith.truncf %45 : vector<8x128xf32> to vector<8x128xbf16>
    %cst_22 = arith.constant dense<0.000000e+00> : vector<8x128xf32>
    %48 = tpu.matmul %47, %46, %cst_22 {dimension_numbers = #tpu.dot_dimension_numbers<[1], [0], [0], [1], [0, 0, 1, 1], [], []>} : vector<8x128xbf16>, vector<128x128xbf16>, vector<8x128xf32> -> vector<8x128xf32>
    %c9 = arith.constant 9 : index
    %c0_23 = arith.constant 0 : index
    %49 = vector.load %arg3[%c9, %c0_23] : memref<16x512xf32, #tpu.memory_space<vmem>>, vector<1x128xf32>
    %50 = vector.broadcast %49 : vector<1x128xf32> to vector<8x128xf32>
    %51 = arith.addf %48, %50 : vector<8x128xf32>
    %cst_24 = arith.constant 0.000000e+00 : f32
    %52 = vector.broadcast %cst_24 : f32 to vector<8x128xf32>
    %53 = arith.maximumf %51, %52 : vector<8x128xf32>
    %c1344 = arith.constant 1344 : index
    %c0_25 = arith.constant 0 : index
    %54 = vector.load %arg2[%c1344, %c0_25] : memref<1472x128xbf16, #tpu.memory_space<vmem>>, vector<128x32xbf16>
    %55 = arith.truncf %53 : vector<8x128xf32> to vector<8x128xbf16>
    %cst_26 = arith.constant dense<0.000000e+00> : vector<8x32xf32>
    %56 = tpu.matmul %55, %54, %cst_26 {dimension_numbers = #tpu.dot_dimension_numbers<[1], [0], [0], [1], [0, 0, 1, 1], [], []>} : vector<8x128xbf16>, vector<128x32xbf16>, vector<8x32xf32> -> vector<8x32xf32>
    %c10 = arith.constant 10 : index
    %c0_27 = arith.constant 0 : index
    %57 = vector.load %arg3[%c10, %c0_27] : memref<16x512xf32, #tpu.memory_space<vmem>>, vector<1x32xf32>
    %58 = vector.broadcast %57 : vector<1x32xf32> to vector<8x32xf32>
    %59 = arith.addf %56, %58 : vector<8x32xf32>
    %cst_28 = arith.constant dense<0.000000e+00> : vector<8xf32>
    %60 = vector.multi_reduction <add>, %45, %cst_28 [1] : vector<8x128xf32> to vector<8xf32>
    %61 = vector.shape_cast %60 : vector<8xf32> to vector<8x1xf32>
    %cst_29 = arith.constant dense<0.000000e+00> : vector<1xf32>
    %62 = vector.multi_reduction <add>, %61, %cst_29 [0] : vector<8x1xf32> to vector<1xf32>
    %63 = vector.shape_cast %62 : vector<1xf32> to vector<1x1xf32>
    %64 = vector.broadcast %61 : vector<8x1xf32> to vector<8x32xf32>
    %65 = arith.mulf %59, %64 : vector<8x32xf32>
    %cst_30 = arith.constant dense<0.000000e+00> : vector<32xf32>
    %66 = vector.multi_reduction <add>, %65, %cst_30 [0] : vector<8x32xf32> to vector<32xf32>
    %67 = vector.shape_cast %66 : vector<32xf32> to vector<1x32xf32>
    %68 = vector.broadcast %63 : vector<1x1xf32> to vector<1x32xf32>
    %69 = arith.divf %67, %68 : vector<1x32xf32>
    %c4 = arith.constant 4 : index
    %c0_31 = arith.constant 0 : index
    %70 = vector.load %arg3[%c4, %c0_31] : memref<16x512xf32, #tpu.memory_space<vmem>>, vector<1x64xf32>
    %71 = vector.broadcast %70 : vector<1x64xf32> to vector<16x64xf32>
    %72 = arith.mulf %44, %71 : vector<16x64xf32>
    %c5 = arith.constant 5 : index
    %c0_32 = arith.constant 0 : index
    %73 = vector.load %arg3[%c5, %c0_32] : memref<16x512xf32, #tpu.memory_space<vmem>>, vector<1x64xf32>
    %74 = vector.broadcast %73 : vector<1x64xf32> to vector<16x64xf32>
    %75 = arith.addf %72, %74 : vector<16x64xf32>
    %cst_33 = arith.constant 0.000000e+00 : f32
    %cst_34 = arith.constant 1.000000e+00 : f32
    %76 = vector.broadcast %cst_33 : f32 to vector<16x64xf32>
    %77 = arith.maximumf %76, %75 : vector<16x64xf32>
    %78 = vector.broadcast %cst_34 : f32 to vector<16x64xf32>
    %79 = arith.minimumf %78, %77 : vector<16x64xf32>
    %c128 = arith.constant 128 : index
    %c0_35 = arith.constant 0 : index
    %80 = vector.load %arg1[%c128, %c0_35] : memref<192x512xbf16, #tpu.memory_space<vmem>>, vector<64x256xbf16>
    %81 = arith.truncf %79 : vector<16x64xf32> to vector<16x64xbf16>
    %cst_36 = arith.constant dense<0.000000e+00> : vector<16x256xf32>
    %82 = tpu.matmul %81, %80, %cst_36 {dimension_numbers = #tpu.dot_dimension_numbers<[1], [0], [0], [1], [0, 0, 1, 1], [], []>} : vector<16x64xbf16>, vector<64x256xbf16>, vector<16x256xf32> -> vector<16x256xf32>
    %83 = vector.extract_strided_slice %82 {offsets = [0, 0], sizes = [16, 128], strides = [1, 1]} : vector<16x256xf32> to vector<16x128xf32>
    %84 = vector.extract_strided_slice %82 {offsets = [0, 128], sizes = [16, 128], strides = [1, 1]} : vector<16x256xf32> to vector<16x128xf32>
    %c1_i32 = arith.constant 1 : i32
    %85 = tpu.dynamic_rotate %84 by %c1_i32 dim 0 : vector<16x128xf32>, i32 -> vector<16x128xf32>
    %86 = tpu.iota {dimensions = array<i32: 0>} : vector<16x128xi32>
    %c0_i32_37 = arith.constant 0 : i32
    %87 = vector.broadcast %c0_i32_37 : i32 to vector<16x128xi32>
    %88 = arith.cmpi eq, %86, %87 : vector<16x128xi32>
    %cst_38 = arith.constant 0.000000e+00 : f32
    %89 = vector.broadcast %cst_38 : f32 to vector<16x128xf32>
    %90 = arith.select %88, %89, %85 : vector<16x128xi1>, vector<16x128xf32>
    %91 = arith.addf %83, %90 : vector<16x128xf32>
    %c6 = arith.constant 6 : index
    %c0_39 = arith.constant 0 : index
    %92 = vector.load %arg3[%c6, %c0_39] : memref<16x512xf32, #tpu.memory_space<vmem>>, vector<1x128xf32>
    %93 = vector.broadcast %92 : vector<1x128xf32> to vector<16x128xf32>
    %94 = arith.addf %91, %93 : vector<16x128xf32>
    %cst_40 = arith.constant 0.000000e+00 : f32
    %95 = vector.broadcast %cst_40 : f32 to vector<16x128xf32>
    %96 = arith.maximumf %94, %95 : vector<16x128xf32>
    %cst_41 = arith.constant 0.000000e+00 : f32
    %97 = vector.broadcast %cst_41 : f32 to vector<1x128xf32>
    %c0_42 = arith.constant 0 : index
    %c0_43 = arith.constant 0 : index
    %98 = vector.load %arg5[%c0_42, %c0_43] : memref<24x128xf32, #tpu.memory_space<vmem>>, vector<1x128xf32>
    tpu.vector_store %arg5[%c0_42, %c0_43], %97 {strides = array<i32>} : memref<24x128xf32, #tpu.memory_space<vmem>>, vector<1x128xf32>,
    %c1_44 = arith.constant 1 : index
    %c0_45 = arith.constant 0 : index
    %99 = vector.load %arg5[%c1_44, %c0_45] : memref<24x128xf32, #tpu.memory_space<vmem>>, vector<16x128xf32>
    tpu.vector_store %arg5[%c1_44, %c0_45], %96 {strides = array<i32>} : memref<24x128xf32, #tpu.memory_space<vmem>>, vector<16x128xf32>,
    %c0_46 = arith.constant 0 : index
    %c0_47 = arith.constant 0 : index
    %100 = tpu.strided_load %arg5[%c0_46, %c0_47] {strides = array<i32: 2, 1>} : memref<24x128xf32, #tpu.memory_space<vmem>>, vector<8x128xf32>
    %c1_48 = arith.constant 1 : index
    %c0_49 = arith.constant 0 : index
    %101 = tpu.strided_load %arg5[%c1_48, %c0_49] {strides = array<i32: 2, 1>} : memref<24x128xf32, #tpu.memory_space<vmem>>, vector<8x128xf32>
    %c2_50 = arith.constant 2 : index
    %c0_51 = arith.constant 0 : index
    %102 = tpu.strided_load %arg5[%c2_50, %c0_51] {strides = array<i32: 2, 1>} : memref<24x128xf32, #tpu.memory_space<vmem>>, vector<8x128xf32>
    %103 = tpu.concatenate %100, %101, %102 in 1 : vector<8x128xf32>, vector<8x128xf32>, vector<8x128xf32> -> vector<8x384xf32>
    %c704 = arith.constant 704 : index
    %c0_52 = arith.constant 0 : index
    %104 = vector.load %arg2[%c704, %c0_52] : memref<1472x128xbf16, #tpu.memory_space<vmem>>, vector<384x128xbf16>
    %105 = arith.truncf %103 : vector<8x384xf32> to vector<8x384xbf16>
    %cst_53 = arith.constant dense<0.000000e+00> : vector<8x128xf32>
    %106 = tpu.matmul %105, %104, %cst_53 {dimension_numbers = #tpu.dot_dimension_numbers<[1], [0], [0], [1], [0, 0, 1, 1], [], []>} : vector<8x384xbf16>, vector<384x128xbf16>, vector<8x128xf32> -> vector<8x128xf32>
    %c7 = arith.constant 7 : index
    %c0_54 = arith.constant 0 : index
    %107 = vector.load %arg3[%c7, %c0_54] : memref<16x512xf32, #tpu.memory_space<vmem>>, vector<1x128xf32>
    %108 = vector.broadcast %107 : vector<1x128xf32> to vector<8x128xf32>
    %109 = arith.addf %106, %108 : vector<8x128xf32>
    %cst_55 = arith.constant 0.000000e+00 : f32
    %110 = vector.broadcast %cst_55 : f32 to vector<8x128xf32>
    %111 = arith.maximumf %109, %110 : vector<8x128xf32>
    %cst_56 = arith.constant dense<0.000000e+00> : vector<128xf32>
    %112 = vector.multi_reduction <add>, %111, %cst_56 [0] : vector<8x128xf32> to vector<128xf32>
    %113 = vector.shape_cast %112 : vector<128xf32> to vector<1x128xf32>
    %c1088 = arith.constant 1088 : index
    %c0_57 = arith.constant 0 : index
    %114 = vector.load %arg2[%c1088, %c0_57] : memref<1472x128xbf16, #tpu.memory_space<vmem>>, vector<128x32xbf16>
    %115 = arith.truncf %113 : vector<1x128xf32> to vector<1x128xbf16>
    %cst_58 = arith.constant dense<0.000000e+00> : vector<1x32xf32>
    %116 = tpu.matmul %115, %114, %cst_58 {dimension_numbers = #tpu.dot_dimension_numbers<[1], [0], [0], [1], [0, 0, 1, 1], [], []>} : vector<1x128xbf16>, vector<128x32xbf16>, vector<1x32xf32> -> vector<1x32xf32>
    %c8_59 = arith.constant 8 : index
    %c0_60 = arith.constant 0 : index
    %117 = vector.load %arg3[%c8_59, %c0_60] : memref<16x512xf32, #tpu.memory_space<vmem>>, vector<1x32xf32>
    %118 = arith.addf %116, %117 : vector<1x32xf32>
    %119 = arith.mulf %118, %118 : vector<1x32xf32>
    %cst_61 = arith.constant dense<0.000000e+00> : vector<1xf32>
    %120 = vector.multi_reduction <add>, %119, %cst_61 [1] : vector<1x32xf32> to vector<1xf32>
    %121 = vector.shape_cast %120 : vector<1xf32> to vector<1x1xf32>
    %cst_62 = arith.constant 9.99999993E-9 : f32
    %122 = vector.broadcast %cst_62 : f32 to vector<1x1xf32>
    %123 = arith.addf %121, %122 : vector<1x1xf32>
    %124 = math.rsqrt %123 : vector<1x1xf32>
    %125 = vector.broadcast %124 : vector<1x1xf32> to vector<1x32xf32>
    %126 = arith.mulf %118, %125 : vector<1x32xf32>
    %127 = arith.mulf %69, %69 : vector<1x32xf32>
    %cst_63 = arith.constant dense<0.000000e+00> : vector<1xf32>
    %128 = vector.multi_reduction <add>, %127, %cst_63 [1] : vector<1x32xf32> to vector<1xf32>
    %129 = vector.shape_cast %128 : vector<1xf32> to vector<1x1xf32>
    %cst_64 = arith.constant 9.99999993E-9 : f32
    %130 = vector.broadcast %cst_64 : f32 to vector<1x1xf32>
    %131 = arith.addf %129, %130 : vector<1x1xf32>
    %132 = math.rsqrt %131 : vector<1x1xf32>
    %133 = vector.broadcast %132 : vector<1x1xf32> to vector<1x32xf32>
    %134 = arith.mulf %69, %133 : vector<1x32xf32>
    %135 = arith.mulf %126, %134 : vector<1x32xf32>
    %cst_65 = arith.constant dense<0.000000e+00> : vector<1xf32>
    %136 = vector.multi_reduction <add>, %135, %cst_65 [1] : vector<1x32xf32> to vector<1xf32>
    %137 = vector.shape_cast %136 : vector<1xf32> to vector<1x1xf32>
    %cst_66 = arith.constant 1.000000e+00 : f32
    %138 = vector.broadcast %cst_66 : f32 to vector<1x1xf32>
    %139 = arith.subf %138, %137 : vector<1x1xf32>
    %cst_67 = arith.constant 5.000000e-01 : f32
    %140 = vector.broadcast %cst_67 : f32 to vector<1x1xf32>
    %141 = arith.mulf %139, %140 : vector<1x1xf32>
    %c0_68 = arith.constant 0 : index
    %c0_69 = arith.constant 0 : index
    %142 = vector.load %arg4[%c0_68, %c0_69] : memref<24x64xf32, #tpu.memory_space<vmem>>, vector<16x64xf32>
    tpu.vector_store %arg4[%c0_68, %c0_69], %44 {strides = array<i32>} : memref<24x64xf32, #tpu.memory_space<vmem>>, vector<16x64xf32>,
    %143 = vector.shape_cast %141 : vector<1x1xf32> to vector<1x1xf32>
    %144 = vector.broadcast %143 : vector<1x1xf32> to vector<8x64xf32>
    %c16 = arith.constant 16 : index
    %c0_70 = arith.constant 0 : index
    %145 = vector.load %arg4[%c16, %c0_70] : memref<24x64xf32, #tpu.memory_space<vmem>>, vector<8x64xf32>
    tpu.vector_store %arg4[%c16, %c0_70], %144 {strides = array<i32>} : memref<24x64xf32, #tpu.memory_space<vmem>>, vector<8x64xf32>,
    return
  }
}

</mosaic_0001>

<llo_original>
// kernel: word2wave_forward.1
$region0: #{word2wave_forward.1}
  #allocation0 [shape = 'u32[]', space=smem, size = 0x4, offset = 0x4, fixed_abs, tag = 'smem constant byte address 0x4 - core index']
  #allocation1 [shape = 'u32[144,128]{1,0:T(1,128)}', space=vmem, size = 0x12000, scoped, tag = 'internal scratch']
  #allocation2 [shape = 'f32[24,128]{1,0:T(8,128)}', space=vmem, size = 0x3000, scoped, tag = 'scratch operand']
  %s0 = inlined_call_operand.vmem [shape: f32[16,128], index: 0, kind: input, shape index: {}]
  %s1 = inlined_call_operand.hbm [shape: bf16[192,512], index: 1, kind: input, shape index: {}]
  %s2 = inlined_call_operand.hbm [shape: bf16[1472,128], index: 2, kind: input, shape index: {}]
  %s3 = inlined_call_operand.hbm [shape: f32[16,512], index: 3, kind: input, shape index: {}]
  %s4 = inlined_call_operand.vmem [shape: f32[24,64], index: 4, kind: output, shape index: {}]
  %s5 = sld [smem:[#allocation0]]
  $region38: #{word2wave_forward.1} parent=0
    _
  %s7 = ssub.s32 1, %s5
  %s8 = scalar_select 0, %s7, %s5
  $region1: #{word2wave_forward.1} parent=0
    #allocation3 [shape = 'u8[196608]{0}', space=vmem, size = 0x30000, scoped, tag = 'input window, operand 1, single buffered']
    #allocation4 [shape = 's32[1]{0}', space=sflag, size = 0x4, scoped, tag = 'scoped memory for word2wave_forward.1']
    #allocation5 [shape = 'u8[376832]{0}', space=vmem, size = 0x5c000, scoped, tag = 'input window, operand 2, single buffered']
    #allocation6 [shape = 's32[1]{0}', space=sflag, size = 0x4, scoped, tag = 'scoped memory for word2wave_forward.1']
    #allocation7 [shape = 'u8[32768]{0}', space=vmem, size = 0x8000, scoped, tag = 'input window, operand 3, single buffered']
    %9 = vsyncpa [#allocation4], 0
    %10 = vsyncpa [#allocation6], 0
    // Predicated region
    $region2: #{word2wave_forward.1} parent=1 // pred_check
      _
    $region3: #{word2wave_forward.1} parent=1 // pred_check_branch
      %12 = sbr.rel (0) target = $region5
    $region4: #{word2wave_forward.1} parent=1 // pred_region
      _
    $region5: #{word2wave_forward.1} parent=1 // pred_fallthru
      _
    // Predicated region
    $region6: #{word2wave_forward.1} parent=1 // pred_check
      _
    $region7: #{word2wave_forward.1} parent=1 // pred_check_branch
      %14 = sbr.rel (0) target = $region9
    $region8: #{word2wave_forward.1} parent=1 // pred_region
      %s16 = ssub.s32 6144, 6144
      %17 = vsyncadd [#allocation4], %s16
      %s18 = sshll.u32 [#allocation3], 4
      %s19 = int_to_ptr.vmem [resolvable:$true] %s18
      %24 = dma.hbm_to_vmem [thread:$0]  %s1, 6144, %s19, [#allocation4], 256, 256, 16
    $region9: #{word2wave_forward.1} parent=1 // pred_fallthru
      _
    // Predicated region
    $region10: #{word2wave_forward.1} parent=1 // pred_check
      _
    $region11: #{word2wave_forward.1} parent=1 // pred_check_branch
      %26 = sbr.rel (0) target = $region13
    $region12: #{word2wave_forward.1} parent=1 // pred_region
      %s28 = ssub.s32 11776, 11776
      %29 = vsyncadd [#allocation6], %s28
      %s30 = sshll.u32 [#allocation5], 4
      %s31 = int_to_ptr.vmem [resolvable:$true] %s30
      %36 = dma.hbm_to_vmem [thread:$0]  %s2, 11776, %s31, [#allocation6], 64, 64, 4
    $region13: #{word2wave_forward.1} parent=1 // pred_fallthru
      _
    // Predicated region
    $region14: #{word2wave_forward.1} parent=1 // pred_check
      _
    $region15: #{word2wave_forward.1} parent=1 // pred_check_branch
      %38 = sbr.rel (0) target = $region17
    $region16: #{word2wave_forward.1} parent=1 // pred_region
      %s40 = ssub.s32 1024, 1024
      %41 = vsyncadd [#allocation6], %s40
      %s42 = sshll.u32 [#allocation7], 4
      %s43 = int_to_ptr.vmem [resolvable:$true] %s42
      %48 = dma.hbm_to_vmem [thread:$0]  %s3, 1024, %s43, [#allocation6], 512, 512, 32
    $region17: #{word2wave_forward.1} parent=1 // pred_fallthru
      _
    // Predicated region
    $region18: #{word2wave_forward.1} parent=1 // pred_check
      _
    $region19: #{word2wave_forward.1} parent=1 // pred_check_branch
      %50 = sbr.rel (0) target = $region21
    $region20: #{word2wave_forward.1} parent=1 // pred_region
      %51 = dma.done [#allocation4], 6144
    $region21: #{word2wave_forward.1} parent=1 // pred_fallthru
      _
    // Predicated region
    $region22: #{word2wave_forward.1} parent=1 // pred_check
      _
    $region23: #{word2wave_forward.1} parent=1 // pred_check_branch
      %53 = sbr.rel (0) target = $region25
    $region24: #{word2wave_forward.1} parent=1 // pred_region
      %54 = dma.done [#allocation6], 11776
    $region25: #{word2wave_forward.1} parent=1 // pred_fallthru
      _
    // Predicated region
    $region26: #{word2wave_forward.1} parent=1 // pred_check
      _
    $region27: #{word2wave_forward.1} parent=1 // pred_check_branch
      %56 = sbr.rel (0) target = $region29
    $region28: #{word2wave_forward.1} parent=1 // pred_region
      %57 = dma.done [#allocation6], 1024
    $region29: #{word2wave_forward.1} parent=1 // pred_fallthru
      _
    %v59 = vld [vmem:[%s0] sm:$0x1]
    %v60 = vld [vmem:[#allocation3] sm:$0xff]
    %v61 = vld [vmem:[#allocation3 + $0x8] sm:$0xff]
    %v62 = vld [vmem:[#allocation3 + $0x10] sm:$0xff]
    %v63 = vld [vmem:[#allocation3 + $0x18] sm:$0xff]
    %v64 = vld [vmem:[#allocation3 + $0x20] sm:$0xff]
    %v65 = vld [vmem:[#allocation3 + $0x28] sm:$0xff]
    %v66 = vld [vmem:[#allocation3 + $0x30] sm:$0xff]
    %v67 = vld [vmem:[#allocation3 + $0x38] sm:$0xff]
    %v68 = vld [vmem:[#allocation3 + $0x40] sm:$0xff]
    %v69 = vld [vmem:[#allocation3 + $0x48] sm:$0xff]
    %v70 = vld [vmem:[#allocation3 + $0x50] sm:$0xff]
    %v71 = vld [vmem:[#allocation3 + $0x58] sm:$0xff]
    %v72 = vld [vmem:[#allocation3 + $0x60] sm:$0xff]
    %v73 = vld [vmem:[#allocation3 + $0x68] sm:$0xff]
    %v74 = vld [vmem:[#allocation3 + $0x70] sm:$0xff]
    %v75 = vld [vmem:[#allocation3 + $0x78] sm:$0xff]
    %v76 = vld [vmem:[#allocation3 + $0x80] sm:$0xff]
    %v77 = vld [vmem:[#allocation3 + $0x88] sm:$0xff]
    %v78 = vld [vmem:[#allocation3 + $0x90] sm:$0xff]
    %v79 = vld [vmem:[#allocation3 + $0x98] sm:$0xff]
    %v80 = vld [vmem:[#allocation3 + $0xa0] sm:$0xff]
    %v81 = vld [vmem:[#allocation3 + $0xa8] sm:$0xff]
    %v82 = vld [vmem:[#allocation3 + $0xb0] sm:$0xff]
    %v83 = vld [vmem:[#allocation3 + $0xb8] sm:$0xff]
    %v84 = vld [vmem:[#allocation3 + $0xc0] sm:$0xff]
    %v85 = vld [vmem:[#allocation3 + $0xc8] sm:$0xff]
    %v86 = vld [vmem:[#allocation3 + $0xd0] sm:$0xff]
    %v87 = vld [vmem:[#allocation3 + $0xd8] sm:$0xff]
    %v88 = vld [vmem:[#allocation3 + $0xe0] sm:$0xff]
    %v89 = vld [vmem:[#allocation3 + $0xe8] sm:$0xff]
    %v90 = vld [vmem:[#allocation3 + $0xf0] sm:$0xff]
    %v91 = vld [vmem:[#allocation3 + $0xf8] sm:$0xff]
    %v92 = vpack.c.bf16 %v59, %v59
    %v93 = vld [vmem:[#allocation7] ss:$8 sm:$0xf]
    %v126 = vunpack.c.l.b16 %v60
    %v127 = vunpack.c.h.b16 %v60
    %v128 = vunpack.c.l.b16 %v61
    %v129 = vunpack.c.h.b16 %v61
    %v130 = vunpack.c.l.b16 %v62
    %v131 = vunpack.c.h.b16 %v62
    %v132 = vunpack.c.l.b16 %v63
    %v133 = vunpack.c.h.b16 %v63
    %v134 = vunpack.c.l.b16 %v64
    %v135 = vunpack.c.h.b16 %v64
    %v136 = vunpack.c.l.b16 %v65
    %v137 = vunpack.c.h.b16 %v65
    %v138 = vunpack.c.l.b16 %v66
    %v139 = vunpack.c.h.b16 %v66
    %v140 = vunpack.c.l.b16 %v67
    %v141 = vunpack.c.h.b16 %v67
    %v142 = vunpack.c.l.b16 %v68
    %v143 = vunpack.c.h.b16 %v68
    %v144 = vunpack.c.l.b16 %v69
    %v145 = vunpack.c.h.b16 %v69
    %v146 = vunpack.c.l.b16 %v70
    %v147 = vunpack.c.h.b16 %v70
    %v148 = vunpack.c.l.b16 %v71
    %v149 = vunpack.c.h.b16 %v71
    %v150 = vunpack.c.l.b16 %v72
    %v151 = vunpack.c.h.b16 %v72
    %v152 = vunpack.c.l.b16 %v73
    %v153 = vunpack.c.h.b16 %v73
    %v154 = vunpack.c.l.b16 %v74
    %v155 = vunpack.c.h.b16 %v74
    %v156 = vunpack.c.l.b16 %v75
    %v157 = vunpack.c.h.b16 %v75
    %v158 = vunpack.c.l.b16 %v76
    %v159 = vunpack.c.h.b16 %v76
    %v160 = vunpack.c.l.b16 %v77
    %v161 = vunpack.c.h.b16 %v77
    %v162 = vunpack.c.l.b16 %v78
    %v163 = vunpack.c.h.b16 %v78
    %v164 = vunpack.c.l.b16 %v79
    %v165 = vunpack.c.h.b16 %v79
    %v166 = vunpack.c.l.b16 %v80
    %v167 = vunpack.c.h.b16 %v80
    %v168 = vunpack.c.l.b16 %v81
    %v169 = vunpack.c.h.b16 %v81
    %v170 = vunpack.c.l.b16 %v82
    %v171 = vunpack.c.h.b16 %v82
    %v172 = vunpack.c.l.b16 %v83
    %v173 = vunpack.c.h.b16 %v83
    %v174 = vunpack.c.l.b16 %v84
    %v175 = vunpack.c.h.b16 %v84
    %v176 = vunpack.c.l.b16 %v85
    %v177 = vunpack.c.h.b16 %v85
    %v178 = vunpack.c.l.b16 %v86
    %v179 = vunpack.c.h.b16 %v86
    %v180 = vunpack.c.l.b16 %v87
    %v181 = vunpack.c.h.b16 %v87
    %v182 = vunpack.c.l.b16 %v88
    %v183 = vunpack.c.h.b16 %v88
    %v184 = vunpack.c.l.b16 %v89
    %v185 = vunpack.c.h.b16 %v89
    %v186 = vunpack.c.l.b16 %v90
    %v187 = vunpack.c.h.b16 %v90
    %v188 = vunpack.c.l.b16 %v91
    %v189 = vunpack.c.h.b16 %v91
    %v190 = vpack.c.b16 %v130, %v126
    %v191 = vpack.c.b16 %v131, %v127
    %v192 = vpack.c.b16 %v132, %v128
    %v193 = vpack.c.b16 %v133, %v129
    %v194 = vpack.c.b16 %v138, %v134
    %v195 = vpack.c.b16 %v139, %v135
    %v196 = vpack.c.b16 %v140, %v136
    %v197 = vpack.c.b16 %v141, %v137
    %v198 = vpack.c.b16 %v146, %v142
    %v199 = vpack.c.b16 %v147, %v143
    %v200 = vpack.c.b16 %v148, %v144
    %v201 = vpack.c.b16 %v149, %v145
    %v202 = vpack.c.b16 %v154, %v150
    %v203 = vpack.c.b16 %v155, %v151
    %v204 = vpack.c.b16 %v156, %v152
    %v205 = vpack.c.b16 %v157, %v153
    %v206 = vpack.c.b16 %v162, %v158
    %v207 = vpack.c.b16 %v163, %v159
    %v208 = vpack.c.b16 %v164, %v160
    %v209 = vpack.c.b16 %v165, %v161
    %v210 = vpack.c.b16 %v170, %v166
    %v211 = vpack.c.b16 %v171, %v167
    %v212 = vpack.c.b16 %v172, %v168
    %v213 = vpack.c.b16 %v173, %v169
    %v214 = vpack.c.b16 %v178, %v174
    %v215 = vpack.c.b16 %v179, %v175
    %v216 = vpack.c.b16 %v180, %v176
    %v217 = vpack.c.b16 %v181, %v177
    %v218 = vpack.c.b16 %v186, %v182
    %v219 = vpack.c.b16 %v187, %v183
    %v220 = vpack.c.b16 %v188, %v184
    %v221 = vpack.c.b16 %v189, %v185
    %v255 = vlaneseq
    %v256 = vshrl.u32 %v255, 7
    %v257 = vsub.s32 0, %v256
    %v258 = vrot.slane %v93, %v257
    %v259 = vlaneseq
    %v260 = vshrl.u32 %v259, 7
    %v261 = vsub.s32 1, %v260
    %v262 = vrot.slane %v93, %v261
    %v263 = vlaneseq
    %v264 = vshrl.u32 %v263, 7
    %v265 = vsub.s32 2, %v264
    %v266 = vrot.slane %v93, %v265
    %v267 = vlaneseq
    %v268 = vshrl.u32 %v267, 7
    %v269 = vsub.s32 3, %v268
    %v270 = vrot.slane %v93, %v269
    %275 = vmatprep.subr.bf16.mxu0 %v219
    %276 = vmatpush1.bf16.msra.mxu0 %v218
    %277 = vmatprep.subr.bf16.mxu0 %v215
    %278 = vmatpush1.bf16.msra.mxu0 %v214
    %279 = vmatprep.subr.bf16.mxu0 %v211
    %280 = vmatpush1.bf16.msra.mxu0 %v210
    %281 = vmatprep.subr.bf16.mxu0 %v207
    %282 = vmatpush1.bf16.msra.mxu0 %v206
    %283 = vmatprep.subr.bf16.mxu0 %v203
    %284 = vmatpush1.bf16.msra.mxu0 %v202
    %285 = vmatprep.subr.bf16.mxu0 %v199
    %286 = vmatpush1.bf16.msra.mxu0 %v198
    %287 = vmatprep.subr.bf16.mxu0 %v195
    %288 = vmatpush1.bf16.msra.mxu0 %v194
    %289 = vmatprep.subr.bf16.mxu0 %v191
    %290 = vmatpush1.bf16.msra.mxu0 %v190
    %291 = vmatprep.subr.bf16.mxu0 0
    %292 = vmatpush2.bf16.msra.mxu0 0
    %293 = vmatprep.subr.bf16.mxu0 0
    %294 = vmatpush2.bf16.msra.mxu0 0
    %295 = vmatprep.subr.bf16.mxu0 0
    %296 = vmatpush2.bf16.msra.mxu0 0
    %297 = vmatprep.subr.bf16.mxu0 0
    %298 = vmatpush2.bf16.msra.mxu0 0
    %299 = vmatprep.subr.bf16.mxu0 0
    %300 = vmatpush2.bf16.msra.mxu0 0
    %301 = vmatprep.subr.bf16.mxu0 0
    %302 = vmatpush2.bf16.msra.mxu0 0
    %303 = vmatprep.subr.bf16.mxu0 0
    %304 = vmatpush2.bf16.msra.mxu0 0
    %305 = vmatprep.subr.bf16.mxu0 0
    %306 = vmatpush2.bf16.msra.mxu0 0
    %307 = vmatprep.mubr.bf16.mxu0 0
    %308 = vmatmul.mubr.bf16.gmra.mxu0 %v92
    %v309 = vpop.f32.mrf.mxu0
    %v310 = vadd.f32 %v258, %v309
    %v311 = vpop.f32.mrf.mxu0
    %v312 = vadd.f32 %v262, %v311
    %v313 = vpop.f32.mrf.mxu0
    %v314 = vpop.f32.mrf.mxu0
    %315 = vdwg.mxu0
    %316 = vmatprep.subr.bf16.mxu0 %v221
    %317 = vmatpush1.bf16.msra.mxu0 %v220
    %318 = vmatprep.subr.bf16.mxu0 %v217
    %319 = vmatpush1.bf16.msra.mxu0 %v216
    %320 = vmatprep.subr.bf16.mxu0 %v213
    %321 = vmatpush1.bf16.msra.mxu0 %v212
    %322 = vmatprep.subr.bf16.mxu0 %v209
    %323 = vmatpush1.bf16.msra.mxu0 %v208
    %324 = vmatprep.subr.bf16.mxu0 %v205
    %325 = vmatpush1.bf16.msra.mxu0 %v204
    %326 = vmatprep.subr.bf16.mxu0 %v201
    %327 = vmatpush1.bf16.msra.mxu0 %v200
    %328 = vmatprep.subr.bf16.mxu0 %v197
    %329 = vmatpush1.bf16.msra.mxu0 %v196
    %330 = vmatprep.subr.bf16.mxu0 %v193
    %331 = vmatpush1.bf16.msra.mxu0 %v192
    %332 = vmatprep.subr.bf16.mxu0 0
    %333 = vmatpush2.bf16.msra.mxu0 0
    %334 = vmatprep.subr.bf16.mxu0 0
    %335 = vmatpush2.bf16.msra.mxu0 0
    %336 = vmatprep.subr.bf16.mxu0 0
    %337 = vmatpush2.bf16.msra.mxu0 0
    %338 = vmatprep.subr.bf16.mxu0 0
    %339 = vmatpush2.bf16.msra.mxu0 0
    %340 = vmatprep.subr.bf16.mxu0 0
    %341 = vmatpush2.bf16.msra.mxu0 0
    %342 = vmatprep.subr.bf16.mxu0 0
    %343 = vmatpush2.bf16.msra.mxu0 0
    %344 = vmatprep.subr.bf16.mxu0 0
    %345 = vmatpush2.bf16.msra.mxu0 0
    %346 = vmatprep.subr.bf16.mxu0 0
    %347 = vmatpush2.bf16.msra.mxu0 0
    %348 = vmatprep.mubr.bf16.mxu0 0
    %349 = vmatmul.mubr.bf16.gmra.mxu0 %v92
    %v350 = vpop.f32.mrf.mxu0
    %v351 = vadd.f32 %v266, %v350
    %v352 = vpop.f32.mrf.mxu0
    %v353 = vadd.f32 %v270, %v352
    %v354 = vpop.f32.mrf.mxu0
    %v355 = vpop.f32.mrf.mxu0
    %356 = vdwg.mxu0
    %v357 = vmax.f32 %v310, 0.0
    %v358 = vmax.f32 %v312, 0.0
    %v359 = vmax.f32 %v351, 0.0
    %v360 = vmax.f32 %v353, 0.0
    %v361 = vlaneseq
    %v362 = vshrl.u32 %v361, 7
    %v363 = vadd.s32 %v362, 8
    %v364 = vlaneseq
    %v365 = vand.u32 %v364, 127
    %v366 = vadd.s32 %v365, 128
    %v367 = vadd.s32 %v365, 256
    %v368 = vadd.s32 %v365, 384
    %v369 = vmul.u32 %v362, 32
    %v370 = vmul.u32 %v363, 32
    %v371 = vsub.s32 %v365, %v369
    %v372 = vsub.s32 %v366, %v369
    %v373 = vsub.s32 %v367, %v369
    %v374 = vsub.s32 %v368, %v369
    %v375 = vsub.s32 %v365, %v370
    %v376 = vsub.s32 %v366, %v370
    %v377 = vsub.s32 %v367, %v370
    %v378 = vsub.s32 %v368, %v370
    %vm379 = vcmp.ge.s32.totalorder %v371, 0
    %vm380 = vcmp.ge.s32.totalorder %v372, 0
    %vm381 = vcmp.ge.s32.totalorder %v373, 0
    %vm382 = vcmp.ge.s32.totalorder %v374, 0
    %vm383 = vcmp.ge.s32.totalorder %v375, 0
    %vm384 = vcmp.ge.s32.totalorder %v376, 0
    %vm385 = vcmp.ge.s32.totalorder %v377, 0
    %vm386 = vcmp.ge.s32.totalorder %v378, 0
    %vm387 = vcmp.lt.s32.totalorder %v371, 32
    %vm388 = vcmp.lt.s32.totalorder %v372, 32
    %vm389 = vcmp.lt.s32.totalorder %v373, 32
    %vm390 = vcmp.lt.s32.totalorder %v374, 32
    %vm391 = vcmp.lt.s32.totalorder %v375, 32
    %vm392 = vcmp.lt.s32.totalorder %v376, 32
    %vm393 = vcmp.lt.s32.totalorder %v377, 32
    %vm394 = vcmp.lt.s32.totalorder %v378, 32
    %vm395 = vmand %vm379, %vm387
    %vm396 = vmand %vm380, %vm388
    %vm397 = vmand %vm381, %vm389
    %vm398 = vmand %vm382, %vm390
    %vm399 = vmand %vm383, %vm391
    %vm400 = vmand %vm384, %vm392
    %vm401 = vmand %vm385, %vm393
    %vm402 = vmand %vm386, %vm394
    %v403 = vlaneseq
    %v404 = vshrl.u32 %v403, 7
    %v405 = vsub.s32 0, %v404
    %v406 = vrot.slane %v357, %v405
    %v407 = vlaneseq
    %v408 = vshrl.u32 %v407, 7
    %v409 = vsub.s32 0, %v408
    %v410 = vrot.slane %v358, %v409
    %v411 = vlaneseq
    %v412 = vshrl.u32 %v411, 7
    %v413 = vsub.s32 0, %v412
    %v414 = vrot.slane %v359, %v413
    %v415 = vlaneseq
    %v416 = vshrl.u32 %v415, 7
    %v417 = vsub.s32 0, %v416
    %v418 = vrot.slane %v360, %v417
    %v419 = vsel %vm395, %v406, 0.0
    %v420 = vsel %vm396, %v410, 0.0
    %v421 = vsel %vm397, %v414, 0.0
    %v422 = vsel %vm398, %v418, 0.0
    %v423 = vsel %vm399, %v406, 0.0
    %v424 = vsel %vm400, %v410, 0.0
    %v425 = vsel %vm401, %v414, 0.0
    %v426 = vsel %vm402, %v418, 0.0
    %v427 = vld [vmem:[#allocation5] sm:$0xf]
    %v428 = vld [vmem:[#allocation5 + $0x4] sm:$0xf]
    %v429 = vld [vmem:[#allocation5 + $0x8] sm:$0xf]
    %v430 = vld [vmem:[#allocation5 + $0xc] sm:$0xf]
    %v431 = vld [vmem:[#allocation5 + $0x10] sm:$0xf]
    %v432 = vld [vmem:[#allocation5 + $0x14] sm:$0xf]
    %v433 = vld [vmem:[#allocation5 + $0x18] sm:$0xf]
    %v434 = vld [vmem:[#allocation5 + $0x1c] sm:$0xf]
    %v435 = vld [vmem:[#allocation5 + $0x20] sm:$0xf]
    %v436 = vld [vmem:[#allocation5 + $0x24] sm:$0xf]
    %v437 = vld [vmem:[#allocation5 + $0x28] sm:$0xf]
    %v438 = vld [vmem:[#allocation5 + $0x2c] sm:$0xf]
    %v439 = vld [vmem:[#allocation5 + $0x30] sm:$0xf]
    %v440 = vld [vmem:[#allocation5 + $0x34] sm:$0xf]
    %v441 = vld [vmem:[#allocation5 + $0x38] sm:$0xf]
    %v442 = vld [vmem:[#allocation5 + $0x3c] sm:$0xf]
    %v443 = vld [vmem:[#allocation5 + $0x40] sm:$0xf]
    %v444 = vld [vmem:[#allocation5 + $0x44] sm:$0xf]
    %v445 = vld [vmem:[#allocation5 + $0x48] sm:$0xf]
    %v446 = vld [vmem:[#allocation5 + $0x4c] sm:$0xf]
    %v447 = vld [vmem:[#allocation5 + $0x50] sm:$0xf]
    %v448 = vld [vmem:[#allocation5 + $0x54] sm:$0xf]
    %v449 = vld [vmem:[#allocation5 + $0x58] sm:$0xf]
    %v450 = vld [vmem:[#allocation5 + $0x5c] sm:$0xf]
    %v451 = vld [vmem:[#allocation5 + $0x60] sm:$0xf]
    %v452 = vld [vmem:[#allocation5 + $0x64] sm:$0xf]
    %v453 = vld [vmem:[#allocation5 + $0x68] sm:$0xf]
    %v454 = vld [vmem:[#allocation5 + $0x6c] sm:$0xf]
    %v455 = vld [vmem:[#allocation5 + $0x70] sm:$0xf]
    %v456 = vld [vmem:[#allocation5 + $0x74] sm:$0xf]
    %v457 = vld [vmem:[#allocation5 + $0x78] sm:$0xf]
    %v458 = vld [vmem:[#allocation5 + $0x7c] sm:$0xf]
    %v459 = vld [vmem:[#allocation5 + $0x80] sm:$0xf]
    %v460 = vld [vmem:[#allocation5 + $0x84] sm:$0xf]
    %v461 = vld [vmem:[#allocation5 + $0x88] sm:$0xf]
    %v462 = vld [vmem:[#allocation5 + $0x8c] sm:$0xf]
    %v463 = vld [vmem:[#allocation5 + $0x90] sm:$0xf]
    %v464 = vld [vmem:[#allocation5 + $0x94] sm:$0xf]
    %v465 = vld [vmem:[#allocation5 + $0x98] sm:$0xf]
    %v466 = vld [vmem:[#allocation5 + $0x9c] sm:$0xf]
    %v467 = vld [vmem:[#allocation5 + $0xa0] sm:$0xf]
    %v468 = vld [vmem:[#allocation5 + $0xa4] sm:$0xf]
    %v469 = vld [vmem:[#allocation5 + $0xa8] sm:$0xf]
    %v470 = vld [vmem:[#allocation5 + $0xac] sm:$0xf]
    %v471 = vld [vmem:[#allocation5 + $0xb0] sm:$0xf]
    %v472 = vld [vmem:[#allocation5 + $0xb4] sm:$0xf]
    %v473 = vld [vmem:[#allocation5 + $0xb8] sm:$0xf]
    %v474 = vld [vmem:[#allocation5 + $0xbc] sm:$0xf]
    %v475 = vld [vmem:[#allocation5 + $0xc0] sm:$0xf]
    %v476 = vld [vmem:[#allocation5 + $0xc4] sm:$0xf]
    %v477 = vld [vmem:[#allocation5 + $0xc8] sm:$0xf]
    %v478 = vld [vmem:[#allocation5 + $0xcc] sm:$0xf]
    %v479 = vld [vmem:[#allocation5 + $0xd0] sm:$0xf]
    %v480 = vld [vmem:[#allocation5 + $0xd4] sm:$0xf]
    %v481 = vld [vmem:[#allocation5 + $0xd8] sm:$0xf]
    %v482 = vld [vmem:[#allocation5 + $0xdc] sm:$0xf]
    %v483 = vld [vmem:[#allocation5 + $0xe0] sm:$0xf]
    %v484 = vld [vmem:[#allocation5 + $0xe4] sm:$0xf]
    %v485 = vld [vmem:[#allocation5 + $0xe8] sm:$0xf]
    %v486 = vld [vmem:[#allocation5 + $0xec] sm:$0xf]
    %v487 = vld [vmem:[#allocation5 + $0xf0] sm:$0xf]
    %v488 = vld [vmem:[#allocation5 + $0xf4] sm:$0xf]
    %v489 = vld [vmem:[#allocation5 + $0xf8] sm:$0xf]
    %v490 = vld [vmem:[#allocation5 + $0xfc] sm:$0xf]
    %v491 = vpack.c.bf16 %v423, %v419
    %v492 = vpack.c.bf16 %v424, %v420
    %v493 = vpack.c.bf16 %v425, %v421
    %v494 = vpack.c.bf16 %v426, %v422
    %v495 = vld [vmem:[#allocation7 + $0x1] ss:$0 sm:$0xff]
    %v560 = vunpack.c.l.b16 %v427
    %v561 = vunpack.c.l.b16 %v428
    %v562 = vunpack.c.l.b16 %v429
    %v563 = vunpack.c.l.b16 %v430
    %v564 = vunpack.c.l.b16 %v431
    %v565 = vunpack.c.l.b16 %v432
    %v566 = vunpack.c.l.b16 %v433
    %v567 = vunpack.c.l.b16 %v434
    %v568 = vunpack.c.l.b16 %v435
    %v569 = vunpack.c.l.b16 %v436
    %v570 = vunpack.c.l.b16 %v437
    %v571 = vunpack.c.l.b16 %v438
    %v572 = vunpack.c.l.b16 %v439
    %v573 = vunpack.c.l.b16 %v440
    %v574 = vunpack.c.l.b16 %v441
    %v575 = vunpack.c.l.b16 %v442
    %v576 = vunpack.c.l.b16 %v443
    %v577 = vunpack.c.l.b16 %v444
    %v578 = vunpack.c.l.b16 %v445
    %v579 = vunpack.c.l.b16 %v446
    %v580 = vunpack.c.l.b16 %v447
    %v581 = vunpack.c.l.b16 %v448
    %v582 = vunpack.c.l.b16 %v449
    %v583 = vunpack.c.l.b16 %v450
    %v584 = vunpack.c.l.b16 %v451
    %v585 = vunpack.c.l.b16 %v452
    %v586 = vunpack.c.l.b16 %v453
    %v587 = vunpack.c.l.b16 %v454
    %v588 = vunpack.c.l.b16 %v455
    %v589 = vunpack.c.l.b16 %v456
    %v590 = vunpack.c.l.b16 %v457
    %v591 = vunpack.c.l.b16 %v458
    %v592 = vunpack.c.l.b16 %v459
    %v593 = vunpack.c.l.b16 %v460
    %v594 = vunpack.c.l.b16 %v461
    %v595 = vunpack.c.l.b16 %v462
    %v596 = vunpack.c.l.b16 %v463
    %v597 = vunpack.c.l.b16 %v464
    %v598 = vunpack.c.l.b16 %v465
    %v599 = vunpack.c.l.b16 %v466
    %v600 = vunpack.c.l.b16 %v467
    %v601 = vunpack.c.l.b16 %v468
    %v602 = vunpack.c.l.b16 %v469
    %v603 = vunpack.c.l.b16 %v470
    %v604 = vunpack.c.l.b16 %v471
    %v605 = vunpack.c.l.b16 %v472
    %v606 = vunpack.c.l.b16 %v473
    %v607 = vunpack.c.l.b16 %v474
    %v608 = vunpack.c.l.b16 %v475
    %v609 = vunpack.c.l.b16 %v476
    %v610 = vunpack.c.l.b16 %v477
    %v611 = vunpack.c.l.b16 %v478
    %v612 = vunpack.c.l.b16 %v479
    %v613 = vunpack.c.l.b16 %v480
    %v614 = vunpack.c.l.b16 %v481
    %v615 = vunpack.c.l.b16 %v482
    %v616 = vunpack.c.l.b16 %v483
    %v617 = vunpack.c.l.b16 %v484
    %v618 = vunpack.c.l.b16 %v485
    %v619 = vunpack.c.l.b16 %v486
    %v620 = vunpack.c.l.b16 %v487
    %v621 = vunpack.c.l.b16 %v488
    %v622 = vunpack.c.l.b16 %v489
    %v623 = vunpack.c.l.b16 %v490
    %v624 = vpack.c.b16 %v561, %v560
    %v625 = vpack.c.b16 %v563, %v562
    %v626 = vpack.c.b16 %v565, %v564
    %v627 = vpack.c.b16 %v567, %v566
    %v628 = vpack.c.b16 %v569, %v568
    %v629 = vpack.c.b16 %v571, %v570
    %v630 = vpack.c.b16 %v573, %v572
    %v631 = vpack.c.b16 %v575, %v574
    %v632 = vpack.c.b16 %v577, %v576
    %v633 = vpack.c.b16 %v579, %v578
    %v634 = vpack.c.b16 %v581, %v580
    %v635 = vpack.c.b16 %v583, %v582
    %v636 = vpack.c.b16 %v585, %v584
    %v637 = vpack.c.b16 %v587, %v586
    %v638 = vpack.c.b16 %v589, %v588
    %v639 = vpack.c.b16 %v591, %v590
    %v640 = vpack.c.b16 %v593, %v592
    %v641 = vpack.c.b16 %v595, %v594
    %v642 = vpack.c.b16 %v597, %v596
    %v643 = vpack.c.b16 %v599, %v598
    %v644 = vpack.c.b16 %v601, %v600
    %v645 = vpack.c.b16 %v603, %v602
    %v646 = vpack.c.b16 %v605, %v604
    %v647 = vpack.c.b16 %v607, %v606
    %v648 = vpack.c.b16 %v609, %v608
    %v649 = vpack.c.b16 %v611, %v610
    %v650 = vpack.c.b16 %v613, %v612
    %v651 = vpack.c.b16 %v615, %v614
    %v652 = vpack.c.b16 %v617, %v616
    %v653 = vpack.c.b16 %v619, %v618
    %v654 = vpack.c.b16 %v621, %v620
    %v655 = vpack.c.b16 %v623, %v622
    %688 = vmatprep.subr.bf16.mxu0 0
    %689 = vmatpush1.bf16.msra.mxu0 %v631
    %690 = vmatprep.subr.bf16.mxu0 0
    %691 = vmatpush1.bf16.msra.mxu0 %v630
    %692 = vmatprep.subr.bf16.mxu0 0
    %693 = vmatpush1.bf16.msra.mxu0 %v629
    %694 = vmatprep.subr.bf16.mxu0 0
    %695 = vmatpush1.bf16.msra.mxu0 %v628
    %696 = vmatprep.subr.bf16.mxu0 0
    %697 = vmatpush1.bf16.msra.mxu0 %v627
    %698 = vmatprep.subr.bf16.mxu0 0
    %699 = vmatpush1.bf16.msra.mxu0 %v626
    %700 = vmatprep.subr.bf16.mxu0 0
    %701 = vmatpush1.bf16.msra.mxu0 %v625
    %702 = vmatprep.subr.bf16.mxu0 0
    %703 = vmatpush1.bf16.msra.mxu0 %v624
    %704 = vmatprep.subr.bf16.mxu0 0
    %705 = vmatpush2.bf16.msra.mxu0 %v639
    %706 = vmatprep.subr.bf16.mxu0 0
    %707 = vmatpush2.bf16.msra.mxu0 %v638
    %708 = vmatprep.subr.bf16.mxu0 0
    %709 = vmatpush2.bf16.msra.mxu0 %v637
    %710 = vmatprep.subr.bf16.mxu0 0
    %711 = vmatpush2.bf16.msra.mxu0 %v636
    %712 = vmatprep.subr.bf16.mxu0 0
    %713 = vmatpush2.bf16.msra.mxu0 %v635
    %714 = vmatprep.subr.bf16.mxu0 0
    %715 = vmatpush2.bf16.msra.mxu0 %v634
    %716 = vmatprep.subr.bf16.mxu0 0
    %717 = vmatpush2.bf16.msra.mxu0 %v633
    %718 = vmatprep.subr.bf16.mxu0 0
    %719 = vmatpush2.bf16.msra.mxu0 %v632
    %720 = vmatprep.mubr.bf16.mxu0 %v492
    %721 = vmatmul.mubr.bf16.gmra.mxu0 %v491
    %v722 = vpop.f32.mrf.mxu0
    %v723 = vadd.f32 %v495, %v722
    %v724 = vpop.f32.mrf.mxu0
    %v725 = vpop.f32.mrf.mxu0
    %v726 = vadd.f32 %v495, %v725
    %v727 = vpop.f32.mrf.mxu0
    %728 = vdwg.mxu0
    %729 = vmatprep.subr.bf16.mxu0 0
    %730 = vmatpush1.bf16.msra.mxu0 %v647
    %731 = vmatprep.subr.bf16.mxu0 0
    %732 = vmatpush1.bf16.msra.mxu0 %v646
    %733 = vmatprep.subr.bf16.mxu0 0
    %734 = vmatpush1.bf16.msra.mxu0 %v645
    %735 = vmatprep.subr.bf16.mxu0 0
    %736 = vmatpush1.bf16.msra.mxu0 %v644
    %737 = vmatprep.subr.bf16.mxu0 0
    %738 = vmatpush1.bf16.msra.mxu0 %v643
    %739 = vmatprep.subr.bf16.mxu0 0
    %740 = vmatpush1.bf16.msra.mxu0 %v642
    %741 = vmatprep.subr.bf16.mxu0 0
    %742 = vmatpush1.bf16.msra.mxu0 %v641
    %743 = vmatprep.subr.bf16.mxu0 0
    %744 = vmatpush1.bf16.msra.mxu0 %v640
    %745 = vmatprep.subr.bf16.mxu0 0
    %746 = vmatpush2.bf16.msra.mxu0 %v655
    %747 = vmatprep.subr.bf16.mxu0 0
    %748 = vmatpush2.bf16.msra.mxu0 %v654
    %749 = vmatprep.subr.bf16.mxu0 0
    %750 = vmatpush2.bf16.msra.mxu0 %v653
    %751 = vmatprep.subr.bf16.mxu0 0
    %752 = vmatpush2.bf16.msra.mxu0 %v652
    %753 = vmatprep.subr.bf16.mxu0 0
    %754 = vmatpush2.bf16.msra.mxu0 %v651
    %755 = vmatprep.subr.bf16.mxu0 0
    %756 = vmatpush2.bf16.msra.mxu0 %v650
    %757 = vmatprep.subr.bf16.mxu0 0
    %758 = vmatpush2.bf16.msra.mxu0 %v649
    %759 = vmatprep.subr.bf16.mxu0 0
    %760 = vmatpush2.bf16.msra.mxu0 %v648
    %761 = vmatprep.mubr.bf16.mxu0 %v494
    %762 = vmatmul.mubr.bf16.gmra.mxu0 %v493
    %v763 = vpop.f32.mrf.mxu0
    %v764 = vadd.f32 %v723, %v763
    %v765 = vpop.f32.mrf.mxu0
    %v766 = vpop.f32.mrf.mxu0
    %v767 = vadd.f32 %v726, %v766
    %v768 = vpop.f32.mrf.mxu0
    %769 = vdwg.mxu0
    %v770 = vmax.f32 %v764, 0.0
    %v771 = vmax.f32 %v767, 0.0
    %v772 = vld [vmem:[#allocation5 + $0x100] sm:$0xf]
    %v773 = vld [vmem:[#allocation5 + $0x104] sm:$0xf]
    %v774 = vld [vmem:[#allocation5 + $0x108] sm:$0xf]
    %v775 = vld [vmem:[#allocation5 + $0x10c] sm:$0xf]
    %v776 = vld [vmem:[#allocation5 + $0x110] sm:$0xf]
    %v777 = vld [vmem:[#allocation5 + $0x114] sm:$0xf]
    %v778 = vld [vmem:[#allocation5 + $0x118] sm:$0xf]
    %v779 = vld [vmem:[#allocation5 + $0x11c] sm:$0xf]
    %v780 = vpack.c.bf16 %v771, %v770
    %v781 = vld [vmem:[#allocation7 + $0x2] ss:$0 sm:$0xff]
    %v790 = vunpack.c.l.b16 %v772
    %v791 = vunpack.c.l.b16 %v773
    %v792 = vunpack.c.l.b16 %v774
    %v793 = vunpack.c.l.b16 %v775
    %v794 = vunpack.c.l.b16 %v776
    %v795 = vunpack.c.l.b16 %v777
    %v796 = vunpack.c.l.b16 %v778
    %v797 = vunpack.c.l.b16 %v779
    %v798 = vpack.c.b16 %v791, %v790
    %v799 = vpack.c.b16 %v793, %v792
    %v800 = vpack.c.b16 %v795, %v794
    %v801 = vpack.c.b16 %v797, %v796
    %vm806 = vcmask 523264
    %v808 = vsel %vm806, %v780, 0
    %810 = vmatprep.subr.bf16.mxu0 0
    %811 = vmatpush1.bf16.msra.mxu0 0
    %812 = vmatprep.subr.bf16.mxu0 0
    %813 = vmatpush1.bf16.msra.mxu0 0
    %814 = vmatprep.subr.bf16.mxu0 0
    %815 = vmatpush1.bf16.msra.mxu0 0
    %816 = vmatprep.subr.bf16.mxu0 0
    %817 = vmatpush1.bf16.msra.mxu0 0
    %818 = vmatprep.subr.bf16.mxu0 0
    %819 = vmatpush1.bf16.msra.mxu0 %v801
    %820 = vmatprep.subr.bf16.mxu0 0
    %821 = vmatpush1.bf16.msra.mxu0 %v800
    %822 = vmatprep.subr.bf16.mxu0 0
    %823 = vmatpush1.bf16.msra.mxu0 %v799
    %824 = vmatprep.subr.bf16.mxu0 0
    %825 = vmatpush1.bf16.msra.mxu0 %v798
    %826 = vmatprep.subr.bf16.mxu0 0
    %827 = vmatpush2.bf16.msra.mxu0 0
    %828 = vmatprep.subr.bf16.mxu0 0
    %829 = vmatpush2.bf16.msra.mxu0 0
    %830 = vmatprep.subr.bf16.mxu0 0
    %831 = vmatpush2.bf16.msra.mxu0 0
    %832 = vmatprep.subr.bf16.mxu0 0
    %833 = vmatpush2.bf16.msra.mxu0 0
    %834 = vmatprep.subr.bf16.mxu0 0
    %835 = vmatpush2.bf16.msra.mxu0 0
    %836 = vmatprep.subr.bf16.mxu0 0
    %837 = vmatpush2.bf16.msra.mxu0 0
    %838 = vmatprep.subr.bf16.mxu0 0
    %839 = vmatpush2.bf16.msra.mxu0 0
    %840 = vmatprep.subr.bf16.mxu0 0
    %841 = vmatpush2.bf16.msra.mxu0 0
    %842 = vmatprep.mubr.bf16.mxu0 0
    %843 = vmatmul.mubr.bf16.gmra.mxu0 %v808
    %v844 = vpop.f32.mrf.mxu0
    %v845 = vadd.f32 %v781, %v844
    %v846 = vpop.f32.mrf.mxu0
    %v847 = vpop.f32.mrf.mxu0
    %v848 = vadd.f32 %v781, %v847
    %v849 = vpop.f32.mrf.mxu0
    %850 = vdwg.mxu0
    %v851 = vmax.f32 %v845, 0.0
    %v852 = vmax.f32 %v848, 0.0
    %v853 = vld [vmem:[#allocation5 + $0x120] sm:$0xf]
    %v854 = vld [vmem:[#allocation5 + $0x124] sm:$0xf]
    %v855 = vld [vmem:[#allocation5 + $0x128] sm:$0xf]
    %v856 = vld [vmem:[#allocation5 + $0x12c] sm:$0xf]
    %v857 = vld [vmem:[#allocation5 + $0x130] sm:$0xf]
    %v858 = vld [vmem:[#allocation5 + $0x134] sm:$0xf]
    %v859 = vld [vmem:[#allocation5 + $0x138] sm:$0xf]
    %v860 = vld [vmem:[#allocation5 + $0x13c] sm:$0xf]
    %v861 = vld [vmem:[#allocation5 + $0x140] sm:$0xf]
    %v862 = vld [vmem:[#allocation5 + $0x144] sm:$0xf]
    %v863 = vld [vmem:[#allocation5 + $0x148] sm:$0xf]
    %v864 = vld [vmem:[#allocation5 + $0x14c] sm:$0xf]
    %v865 = vld [vmem:[#allocation5 + $0x150] sm:$0xf]
    %v866 = vld [vmem:[#allocation5 + $0x154] sm:$0xf]
    %v867 = vld [vmem:[#allocation5 + $0x158] sm:$0xf]
    %v868 = vld [vmem:[#allocation5 + $0x15c] sm:$0xf]
    %v869 = vpack.c.bf16 %v852, %v851
    %v870 = vld [vmem:[#allocation7 + $0x3] ss:$0 sm:$0xff]
    %v887 = vunpack.c.l.b16 %v853
    %v888 = vunpack.c.l.b16 %v854
    %v889 = vunpack.c.l.b16 %v855
    %v890 = vunpack.c.l.b16 %v856
    %v891 = vunpack.c.l.b16 %v857
    %v892 = vunpack.c.l.b16 %v858
    %v893 = vunpack.c.l.b16 %v859
    %v894 = vunpack.c.l.b16 %v860
    %v895 = vunpack.c.l.b16 %v861
    %v896 = vunpack.c.l.b16 %v862
    %v897 = vunpack.c.l.b16 %v863
    %v898 = vunpack.c.l.b16 %v864
    %v899 = vunpack.c.l.b16 %v865
    %v900 = vunpack.c.l.b16 %v866
    %v901 = vunpack.c.l.b16 %v867
    %v902 = vunpack.c.l.b16 %v868
    %v903 = vpack.c.b16 %v888, %v887
    %v904 = vpack.c.b16 %v890, %v889
    %v905 = vpack.c.b16 %v892, %v891
    %v906 = vpack.c.b16 %v894, %v893
    %v907 = vpack.c.b16 %v896, %v895
    %v908 = vpack.c.b16 %v898, %v897
    %v909 = vpack.c.b16 %v900, %v899
    %v910 = vpack.c.b16 %v902, %v901
    %919 = vmatprep.subr.bf16.mxu0 0
    %920 = vmatpush1.bf16.msra.mxu0 %v910
    %921 = vmatprep.subr.bf16.mxu0 0
    %922 = vmatpush1.bf16.msra.mxu0 %v909
    %923 = vmatprep.subr.bf16.mxu0 0
    %924 = vmatpush1.bf16.msra.mxu0 %v908
    %925 = vmatprep.subr.bf16.mxu0 0
    %926 = vmatpush1.bf16.msra.mxu0 %v907
    %927 = vmatprep.subr.bf16.mxu0 0
    %928 = vmatpush1.bf16.msra.mxu0 %v906
    %929 = vmatprep.subr.bf16.mxu0 0
    %930 = vmatpush1.bf16.msra.mxu0 %v905
    %931 = vmatprep.subr.bf16.mxu0 0
    %932 = vmatpush1.bf16.msra.mxu0 %v904
    %933 = vmatprep.subr.bf16.mxu0 0
    %934 = vmatpush1.bf16.msra.mxu0 %v903
    %935 = vmatprep.subr.bf16.mxu0 0
    %936 = vmatpush2.bf16.msra.mxu0 0
    %937 = vmatprep.subr.bf16.mxu0 0
    %938 = vmatpush2.bf16.msra.mxu0 0
    %939 = vmatprep.subr.bf16.mxu0 0
    %940 = vmatpush2.bf16.msra.mxu0 0
    %941 = vmatprep.subr.bf16.mxu0 0
    %942 = vmatpush2.bf16.msra.mxu0 0
    %943 = vmatprep.subr.bf16.mxu0 0
    %944 = vmatpush2.bf16.msra.mxu0 0
    %945 = vmatprep.subr.bf16.mxu0 0
    %946 = vmatpush2.bf16.msra.mxu0 0
    %947 = vmatprep.subr.bf16.mxu0 0
    %948 = vmatpush2.bf16.msra.mxu0 0
    %949 = vmatprep.subr.bf16.mxu0 0
    %950 = vmatpush2.bf16.msra.mxu0 0
    %951 = vmatprep.mubr.bf16.mxu0 0
    %952 = vmatmul.mubr.bf16.gmra.mxu0 %v869
    %v953 = vpop.f32.mrf.mxu0
    %v954 = vadd.f32 %v870, %v953
    %v955 = vpop.f32.mrf.mxu0
    %v956 = vpop.f32.mrf.mxu0
    %v957 = vadd.f32 %v870, %v956
    %v958 = vpop.f32.mrf.mxu0
    %959 = vdwg.mxu0
    %v960 = vtanh.pop %v954
    %v961 = vtanh.pop %v957
    %v962 = vld [vmem:[%s0 + $0x8] sm:$0xff]
    %v963 = vld [vmem:[#allocation5 + $0x260] sm:$0xf]
    %v964 = vld [vmem:[#allocation5 + $0x264] sm:$0xf]
    %v965 = vld [vmem:[#allocation5 + $0x268] sm:$0xf]
    %v966 = vld [vmem:[#allocation5 + $0x26c] sm:$0xf]
    %v967 = vld [vmem:[#allocation5 + $0x270] sm:$0xf]
    %v968 = vld [vmem:[#allocation5 + $0x274] sm:$0xf]
    %v969 = vld [vmem:[#allocation5 + $0x278] sm:$0xf]
    %v970 = vld [vmem:[#allocation5 + $0x27c] sm:$0xf]
    %v971 = vld [vmem:[#allocation5 + $0x280] sm:$0xf]
    %v972 = vld [vmem:[#allocation5 + $0x284] sm:$0xf]
    %v973 = vld [vmem:[#allocation5 + $0x288] sm:$0xf]
    %v974 = vld [vmem:[#allocation5 + $0x28c] sm:$0xf]
    %v975 = vld [vmem:[#allocation5 + $0x290] sm:$0xf]
    %v976 = vld [vmem:[#allocation5 + $0x294] sm:$0xf]
    %v977 = vld [vmem:[#allocation5 + $0x298] sm:$0xf]
    %v978 = vld [vmem:[#allocation5 + $0x29c] sm:$0xf]
    %v979 = vpack.c.bf16 %v962, %v962
    %v980 = vld [vmem:[#allocation7 + $0x21] ss:$0 sm:$0xff]
    %v997 = vunpack.c.l.b16 %v963
    %v998 = vunpack.c.l.b16 %v964
    %v999 = vunpack.c.l.b16 %v965
    %v1000 = vunpack.c.l.b16 %v966
    %v1001 = vunpack.c.l.b16 %v967
    %v1002 = vunpack.c.l.b16 %v968
    %v1003 = vunpack.c.l.b16 %v969
    %v1004 = vunpack.c.l.b16 %v970
    %v1005 = vunpack.c.l.b16 %v971
    %v1006 = vunpack.c.l.b16 %v972
    %v1007 = vunpack.c.l.b16 %v973
    %v1008 = vunpack.c.l.b16 %v974
    %v1009 = vunpack.c.l.b16 %v975
    %v1010 = vunpack.c.l.b16 %v976
    %v1011 = vunpack.c.l.b16 %v977
    %v1012 = vunpack.c.l.b16 %v978
    %v1013 = vpack.c.b16 %v998, %v997
    %v1014 = vpack.c.b16 %v1000, %v999
    %v1015 = vpack.c.b16 %v1002, %v1001
    %v1016 = vpack.c.b16 %v1004, %v1003
    %v1017 = vpack.c.b16 %v1006, %v1005
    %v1018 = vpack.c.b16 %v1008, %v1007
    %v1019 = vpack.c.b16 %v1010, %v1009
    %v1020 = vpack.c.b16 %v1012, %v1011
    %1029 = vmatprep.subr.bf16.mxu0 0
    %1030 = vmatpush1.bf16.msra.mxu0 %v1020
    %1031 = vmatprep.subr.bf16.mxu0 0
    %1032 = vmatpush1.bf16.msra.mxu0 %v1019
    %1033 = vmatprep.subr.bf16.mxu0 0
    %1034 = vmatpush1.bf16.msra.mxu0 %v1018
    %1035 = vmatprep.subr.bf16.mxu0 0
    %1036 = vmatpush1.bf16.msra.mxu0 %v1017
    %1037 = vmatprep.subr.bf16.mxu0 0
    %1038 = vmatpush1.bf16.msra.mxu0 %v1016
    %1039 = vmatprep.subr.bf16.mxu0 0
    %1040 = vmatpush1.bf16.msra.mxu0 %v1015
    %1041 = vmatprep.subr.bf16.mxu0 0
    %1042 = vmatpush1.bf16.msra.mxu0 %v1014
    %1043 = vmatprep.subr.bf16.mxu0 0
    %1044 = vmatpush1.bf16.msra.mxu0 %v1013
    %1045 = vmatprep.subr.bf16.mxu0 0
    %1046 = vmatpush2.bf16.msra.mxu0 0
    %1047 = vmatprep.subr.bf16.mxu0 0
    %1048 = vmatpush2.bf16.msra.mxu0 0
    %1049 = vmatprep.subr.bf16.mxu0 0
    %1050 = vmatpush2.bf16.msra.mxu0 0
    %1051 = vmatprep.subr.bf16.mxu0 0
    %1052 = vmatpush2.bf16.msra.mxu0 0
    %1053 = vmatprep.subr.bf16.mxu0 0
    %1054 = vmatpush2.bf16.msra.mxu0 0
    %1055 = vmatprep.subr.bf16.mxu0 0
    %1056 = vmatpush2.bf16.msra.mxu0 0
    %1057 = vmatprep.subr.bf16.mxu0 0
    %1058 = vmatpush2.bf16.msra.mxu0 0
    %1059 = vmatprep.subr.bf16.mxu0 0
    %1060 = vmatpush2.bf16.msra.mxu0 0
    %1061 = vmatprep.mubr.bf16.mxu0 0
    %1062 = vmatmul.mubr.bf16.gmra.mxu0 %v979
    %v1063 = vpop.f32.mrf.mxu0
    %v1064 = vadd.f32 %v980, %v1063
    %v1065 = vpop.f32.mrf.mxu0
    %v1066 = vpop.f32.mrf.mxu0
    %v1067 = vpop.f32.mrf.mxu0
    %1068 = vdwg.mxu0
    %v1069 = vmax.f32 %v1064, 0.0
    %v1070 = vld [vmem:[#allocation5 + $0x2a0] sm:$0xf]
    %v1071 = vld [vmem:[#allocation5 + $0x2a4] sm:$0xf]
    %v1072 = vld [vmem:[#allocation5 + $0x2a8] sm:$0xf]
    %v1073 = vld [vmem:[#allocation5 + $0x2ac] sm:$0xf]
    %v1074 = vld [vmem:[#allocation5 + $0x2b0] sm:$0xf]
    %v1075 = vld [vmem:[#allocation5 + $0x2b4] sm:$0xf]
    %v1076 = vld [vmem:[#allocation5 + $0x2b8] sm:$0xf]
    %v1077 = vld [vmem:[#allocation5 + $0x2bc] sm:$0xf]
    %v1078 = vld [vmem:[#allocation5 + $0x2c0] sm:$0xf]
    %v1079 = vld [vmem:[#allocation5 + $0x2c4] sm:$0xf]
    %v1080 = vld [vmem:[#allocation5 + $0x2c8] sm:$0xf]
    %v1081 = vld [vmem:[#allocation5 + $0x2cc] sm:$0xf]
    %v1082 = vld [vmem:[#allocation5 + $0x2d0] sm:$0xf]
    %v1083 = vld [vmem:[#allocation5 + $0x2d4] sm:$0xf]
    %v1084 = vld [vmem:[#allocation5 + $0x2d8] sm:$0xf]
    %v1085 = vld [vmem:[#allocation5 + $0x2dc] sm:$0xf]
    %v1086 = vpack.c.bf16 %v1069, %v1069
    %v1087 = vld [vmem:[#allocation7 + $0x22] ss:$0 sm:$0xff]
    %v1104 = vunpack.c.l.b16 %v1070
    %v1105 = vunpack.c.l.b16 %v1071
    %v1106 = vunpack.c.l.b16 %v1072
    %v1107 = vunpack.c.l.b16 %v1073
    %v1108 = vunpack.c.l.b16 %v1074
    %v1109 = vunpack.c.l.b16 %v1075
    %v1110 = vunpack.c.l.b16 %v1076
    %v1111 = vunpack.c.l.b16 %v1077
    %v1112 = vunpack.c.l.b16 %v1078
    %v1113 = vunpack.c.l.b16 %v1079
    %v1114 = vunpack.c.l.b16 %v1080
    %v1115 = vunpack.c.l.b16 %v1081
    %v1116 = vunpack.c.l.b16 %v1082
    %v1117 = vunpack.c.l.b16 %v1083
    %v1118 = vunpack.c.l.b16 %v1084
    %v1119 = vunpack.c.l.b16 %v1085
    %v1120 = vpack.c.b16 %v1105, %v1104
    %v1121 = vpack.c.b16 %v1107, %v1106
    %v1122 = vpack.c.b16 %v1109, %v1108
    %v1123 = vpack.c.b16 %v1111, %v1110
    %v1124 = vpack.c.b16 %v1113, %v1112
    %v1125 = vpack.c.b16 %v1115, %v1114
    %v1126 = vpack.c.b16 %v1117, %v1116
    %v1127 = vpack.c.b16 %v1119, %v1118
    %1136 = vmatprep.subr.bf16.mxu0 0
    %1137 = vmatpush1.bf16.msra.mxu0 %v1127
    %1138 = vmatprep.subr.bf16.mxu0 0
    %1139 = vmatpush1.bf16.msra.mxu0 %v1126
    %1140 = vmatprep.subr.bf16.mxu0 0
    %1141 = vmatpush1.bf16.msra.mxu0 %v1125
    %1142 = vmatprep.subr.bf16.mxu0 0
    %1143 = vmatpush1.bf16.msra.mxu0 %v1124
    %1144 = vmatprep.subr.bf16.mxu0 0
    %1145 = vmatpush1.bf16.msra.mxu0 %v1123
    %1146 = vmatprep.subr.bf16.mxu0 0
    %1147 = vmatpush1.bf16.msra.mxu0 %v1122
    %1148 = vmatprep.subr.bf16.mxu0 0
    %1149 = vmatpush1.bf16.msra.mxu0 %v1121
    %1150 = vmatprep.subr.bf16.mxu0 0
    %1151 = vmatpush1.bf16.msra.mxu0 %v1120
    %1152 = vmatprep.subr.bf16.mxu0 0
    %1153 = vmatpush2.bf16.msra.mxu0 0
    %1154 = vmatprep.subr.bf16.mxu0 0
    %1155 = vmatpush2.bf16.msra.mxu0 0
    %1156 = vmatprep.subr.bf16.mxu0 0
    %1157 = vmatpush2.bf16.msra.mxu0 0
    %1158 = vmatprep.subr.bf16.mxu0 0
    %1159 = vmatpush2.bf16.msra.mxu0 0
    %1160 = vmatprep.subr.bf16.mxu0 0
    %1161 = vmatpush2.bf16.msra.mxu0 0
    %1162 = vmatprep.subr.bf16.mxu0 0
    %1163 = vmatpush2.bf16.msra.mxu0 0
    %1164 = vmatprep.subr.bf16.mxu0 0
    %1165 = vmatpush2.bf16.msra.mxu0 0
    %1166 = vmatprep.subr.bf16.mxu0 0
    %1167 = vmatpush2.bf16.msra.mxu0 0
    %1168 = vmatprep.mubr.bf16.mxu0 0
    %1169 = vmatmul.mubr.bf16.gmra.mxu0 %v1086
    %v1170 = vpop.f32.mrf.mxu0
    %v1171 = vadd.f32 %v1087, %v1170
    %v1172 = vpop.f32.mrf.mxu0
    %v1173 = vpop.f32.mrf.mxu0
    %v1174 = vpop.f32.mrf.mxu0
    %1175 = vdwg.mxu0
    %1176 = vadd.xlane.f32.xlu0 %v962
    %v1177 = vpop.xlane.xlu0 %1176
    %v1178 = vrot.slane %v1177, 4
    %v1179 = vadd.f32 %v1177, %v1178
    %v1180 = vrot.slane %v1179, 2
    %v1181 = vadd.f32 %v1179, %v1180
    %v1182 = vrot.slane %v1181, 1
    %v1183 = vadd.f32 %v1181, %v1182
    %v1184 = vmul.f32 %v1171, %v1177
    %vm1185 = vcmask 261120
    %v1186 = vsel %vm1185, %v1184, 0.0
    %v1187 = vrot.slane %v1186, 4
    %v1188 = vadd.f32 %v1186, %v1187
    %v1189 = vrot.slane %v1188, 2
    %v1190 = vadd.f32 %v1188, %v1189
    %v1191 = vrot.slane %v1190, 1
    %v1192 = vadd.f32 %v1190, %v1191
    %v1193 = vrcp.pop %v1183
    %v1194 = vmul.f32 %v1192, %v1193
    %v1195 = vld [vmem:[#allocation7 + $0x4] ss:$0 sm:$0xff]
    %v1196 = vmul.f32 %v960, %v1195
    %v1197 = vmul.f32 %v961, %v1195
    %v1198 = vld [vmem:[#allocation7 + $0x5] ss:$0 sm:$0xff]
    %v1199 = vadd.f32 %v1196, %v1198
    %v1200 = vadd.f32 %v1197, %v1198
    %v1201 = vmax.f32 %v1199, 0.0
    %v1202 = vmax.f32 %v1200, 0.0
    %v1203 = vmin.f32 %v1201, 1.0
    %v1204 = vmin.f32 %v1202, 1.0
    %v1205 = vld [vmem:[#allocation3 + $0x100] sm:$0xff]
    %v1206 = vld [vmem:[#allocation3 + $0x110] sm:$0xff]
    %v1207 = vld [vmem:[#allocation3 + $0x120] sm:$0xff]
    %v1208 = vld [vmem:[#allocation3 + $0x130] sm:$0xff]
    %v1209 = vld [vmem:[#allocation3 + $0x140] sm:$0xff]
    %v1210 = vld [vmem:[#allocation3 + $0x150] sm:$0xff]
    %v1211 = vld [vmem:[#allocation3 + $0x160] sm:$0xff]
    %v1212 = vld [vmem:[#allocation3 + $0x170] sm:$0xff]
    %v1213 = vpack.c.bf16 %v1204, %v1203
    %v1222 = vunpack.c.l.b16 %v1205
    %v1223 = vunpack.c.h.b16 %v1205
    %v1224 = vunpack.c.l.b16 %v1206
    %v1225 = vunpack.c.h.b16 %v1206
    %v1226 = vunpack.c.l.b16 %v1207
    %v1227 = vunpack.c.h.b16 %v1207
    %v1228 = vunpack.c.l.b16 %v1208
    %v1229 = vunpack.c.h.b16 %v1208
    %v1230 = vunpack.c.l.b16 %v1209
    %v1231 = vunpack.c.h.b16 %v1209
    %v1232 = vunpack.c.l.b16 %v1210
    %v1233 = vunpack.c.h.b16 %v1210
    %v1234 = vunpack.c.l.b16 %v1211
    %v1235 = vunpack.c.h.b16 %v1211
    %v1236 = vunpack.c.l.b16 %v1212
    %v1237 = vunpack.c.h.b16 %v1212
    %v1238 = vpack.c.b16 %v1224, %v1222
    %v1239 = vpack.c.b16 %v1225, %v1223
    %v1240 = vpack.c.b16 %v1228, %v1226
    %v1241 = vpack.c.b16 %v1229, %v1227
    %v1242 = vpack.c.b16 %v1232, %v1230
    %v1243 = vpack.c.b16 %v1233, %v1231
    %v1244 = vpack.c.b16 %v1236, %v1234
    %v1245 = vpack.c.b16 %v1237, %v1235
    %v1255 = vsel %vm806, %v1213, 0
    %1257 = vmatprep.subr.bf16.mxu0 0
    %1258 = vmatpush1.bf16.msra.mxu0 0
    %1259 = vmatprep.subr.bf16.mxu0 0
    %1260 = vmatpush1.bf16.msra.mxu0 0
    %1261 = vmatprep.subr.bf16.mxu0 0
    %1262 = vmatpush1.bf16.msra.mxu0 0
    %1263 = vmatprep.subr.bf16.mxu0 0
    %1264 = vmatpush1.bf16.msra.mxu0 0
    %1265 = vmatprep.subr.bf16.mxu0 %v1245
    %1266 = vmatpush1.bf16.msra.mxu0 %v1244
    %1267 = vmatprep.subr.bf16.mxu0 %v1243
    %1268 = vmatpush1.bf16.msra.mxu0 %v1242
    %1269 = vmatprep.subr.bf16.mxu0 %v1241
    %1270 = vmatpush1.bf16.msra.mxu0 %v1240
    %1271 = vmatprep.subr.bf16.mxu0 %v1239
    %1272 = vmatpush1.bf16.msra.mxu0 %v1238
    %1273 = vmatprep.subr.bf16.mxu0 0
    %1274 = vmatpush2.bf16.msra.mxu0 0
    %1275 = vmatprep.subr.bf16.mxu0 0
    %1276 = vmatpush2.bf16.msra.mxu0 0
    %1277 = vmatprep.subr.bf16.mxu0 0
    %1278 = vmatpush2.bf16.msra.mxu0 0
    %1279 = vmatprep.subr.bf16.mxu0 0
    %1280 = vmatpush2.bf16.msra.mxu0 0
    %1281 = vmatprep.subr.bf16.mxu0 0
    %1282 = vmatpush2.bf16.msra.mxu0 0
    %1283 = vmatprep.subr.bf16.mxu0 0
    %1284 = vmatpush2.bf16.msra.mxu0 0
    %1285 = vmatprep.subr.bf16.mxu0 0
    %1286 = vmatpush2.bf16.msra.mxu0 0
    %1287 = vmatprep.subr.bf16.mxu0 0
    %1288 = vmatpush2.bf16.msra.mxu0 0
    %1289 = vmatprep.mubr.bf16.mxu0 0
    %1290 = vmatmul.mubr.bf16.gmra.mxu0 %v1255
    %v1291 = vpop.f32.mrf.mxu0
    %v1292 = vadd.f32 0.0, %v1291
    %v1293 = vpop.f32.mrf.mxu0
    %v1294 = vadd.f32 0.0, %v1293
    %v1295 = vpop.f32.mrf.mxu0
    %v1296 = vadd.f32 0.0, %v1295
    %v1297 = vpop.f32.mrf.mxu0
    %v1298 = vadd.f32 0.0, %v1297
    %1299 = vdwg.mxu0
    %v1300 = vrot.slane %v1294, 7
    %v1301 = vrot.slane %v1298, 7
    %vm1302 = vcmp.lt.s32.totalorder %v362, 1
    %v1303 = vsel %vm1302, %v1300, %v1301
    %v1304 = vsel %vm1302, %v1301, %v1300
    %vm1305 = vcmp.eq.s32.totalorder %v362, 0
    %vm1306 = vcmp.eq.s32.totalorder %v363, 0
    %v1307 = vsel %vm1305, 0.0, %v1304
    %v1308 = vsel %vm1306, 0.0, %v1303
    %v1309 = vadd.f32 %v1292, %v1307
    %v1310 = vadd.f32 %v1296, %v1308
    %v1311 = vld [vmem:[#allocation7 + $0x6] ss:$0 sm:$0xff]
    %v1312 = vadd.f32 %v1309, %v1311
    %v1313 = vadd.f32 %v1310, %v1311
    %v1314 = vmax.f32 %v1312, 0.0
    %v1315 = vmax.f32 %v1313, 0.0
    %1316 = vst [vmem:[#allocation2] sm:$0x1] 0.0
    %1317 = vst [vmem:[#allocation2 + $0x1] sm:$0xff] %v1314
    %1318 = vst [vmem:[#allocation2 + $0x9] sm:$0xff] %v1315
    %v1319 = vld [vmem:[#allocation2] ss:$2 sm:$0xff]
    %s1320 = scalar_lea.vmem [#allocation2], 1
    %v1321 = vld [vmem:[%s1320] ss:$2 sm:$0xff]
    %s1322 = scalar_lea.vmem [#allocation2], 2
    %v1323 = vld [vmem:[%s1322] ss:$2 sm:$0xff]
    %v1324 = vld [vmem:[#allocation5 + $0x160] sm:$0xf]
    %v1325 = vld [vmem:[#allocation5 + $0x164] sm:$0xf]
    %v1326 = vld [vmem:[#allocation5 + $0x168] sm:$0xf]
    %v1327 = vld [vmem:[#allocation5 + $0x16c] sm:$0xf]
    %v1328 = vld [vmem:[#allocation5 + $0x170] sm:$0xf]
    %v1329 = vld [vmem:[#allocation5 + $0x174] sm:$0xf]
    %v1330 = vld [vmem:[#allocation5 + $0x178] sm:$0xf]
    %v1331 = vld [vmem:[#allocation5 + $0x17c] sm:$0xf]
    %v1332 = vld [vmem:[#allocation5 + $0x180] sm:$0xf]
    %v1333 = vld [vmem:[#allocation5 + $0x184] sm:$0xf]
    %v1334 = vld [vmem:[#allocation5 + $0x188] sm:$0xf]
    %v1335 = vld [vmem:[#allocation5 + $0x18c] sm:$0xf]
    %v1336 = vld [vmem:[#allocation5 + $0x190] sm:$0xf]
    %v1337 = vld [vmem:[#allocation5 + $0x194] sm:$0xf]
    %v1338 = vld [vmem:[#allocation5 + $0x198] sm:$0xf]
    %v1339 = vld [vmem:[#allocation5 + $0x19c] sm:$0xf]
    %v1340 = vld [vmem:[#allocation5 + $0x1a0] sm:$0xf]
    %v1341 = vld [vmem:[#allocation5 + $0x1a4] sm:$0xf]
    %v1342 = vld [vmem:[#allocation5 + $0x1a8] sm:$0xf]
    %v1343 = vld [vmem:[#allocation5 + $0x1ac] sm:$0xf]
    %v1344 = vld [vmem:[#allocation5 + $0x1b0] sm:$0xf]
    %v1345 = vld [vmem:[#allocation5 + $0x1b4] sm:$0xf]
    %v1346 = vld [vmem:[#allocation5 + $0x1b8] sm:$0xf]
    %v1347 = vld [vmem:[#allocation5 + $0x1bc] sm:$0xf]
    %v1348 = vld [vmem:[#allocation5 + $0x1c0] sm:$0xf]
    %v1349 = vld [vmem:[#allocation5 + $0x1c4] sm:$0xf]
    %v1350 = vld [vmem:[#allocation5 + $0x1c8] sm:$0xf]
    %v1351 = vld [vmem:[#allocation5 + $0x1cc] sm:$0xf]
    %v1352 = vld [vmem:[#allocation5 + $0x1d0] sm:$0xf]
    %v1353 = vld [vmem:[#allocation5 + $0x1d4] sm:$0xf]
    %v1354 = vld [vmem:[#allocation5 + $0x1d8] sm:$0xf]
    %v1355 = vld [vmem:[#allocation5 + $0x1dc] sm:$0xf]
    %v1356 = vld [vmem:[#allocation5 + $0x1e0] sm:$0xf]
    %v1357 = vld [vmem:[#allocation5 + $0x1e4] sm:$0xf]
    %v1358 = vld [vmem:[#allocation5 + $0x1e8] sm:$0xf]
    %v1359 = vld [vmem:[#allocation5 + $0x1ec] sm:$0xf]
    %v1360 = vld [vmem:[#allocation5 + $0x1f0] sm:$0xf]
    %v1361 = vld [vmem:[#allocation5 + $0x1f4] sm:$0xf]
    %v1362 = vld [vmem:[#allocation5 + $0x1f8] sm:$0xf]
    %v1363 = vld [vmem:[#allocation5 + $0x1fc] sm:$0xf]
    %v1364 = vld [vmem:[#allocation5 + $0x200] sm:$0xf]
    %v1365 = vld [vmem:[#allocation5 + $0x204] sm:$0xf]
    %v1366 = vld [vmem:[#allocation5 + $0x208] sm:$0xf]
    %v1367 = vld [vmem:[#allocation5 + $0x20c] sm:$0xf]
    %v1368 = vld [vmem:[#allocation5 + $0x210] sm:$0xf]
    %v1369 = vld [vmem:[#allocation5 + $0x214] sm:$0xf]
    %v1370 = vld [vmem:[#allocation5 + $0x218] sm:$0xf]
    %v1371 = vld [vmem:[#allocation5 + $0x21c] sm:$0xf]
    %v1372 = vpack.c.bf16 %v1319, %v1319
    %v1373 = vpack.c.bf16 %v1321, %v1321
    %v1374 = vpack.c.bf16 %v1323, %v1323
    %v1375 = vld [vmem:[#allocation7 + $0x7] ss:$0 sm:$0xff]
    %v1424 = vunpack.c.l.b16 %v1324
    %v1425 = vunpack.c.l.b16 %v1325
    %v1426 = vunpack.c.l.b16 %v1326
    %v1427 = vunpack.c.l.b16 %v1327
    %v1428 = vunpack.c.l.b16 %v1328
    %v1429 = vunpack.c.l.b16 %v1329
    %v1430 = vunpack.c.l.b16 %v1330
    %v1431 = vunpack.c.l.b16 %v1331
    %v1432 = vunpack.c.l.b16 %v1332
    %v1433 = vunpack.c.l.b16 %v1333
    %v1434 = vunpack.c.l.b16 %v1334
    %v1435 = vunpack.c.l.b16 %v1335
    %v1436 = vunpack.c.l.b16 %v1336
    %v1437 = vunpack.c.l.b16 %v1337
    %v1438 = vunpack.c.l.b16 %v1338
    %v1439 = vunpack.c.l.b16 %v1339
    %v1440 = vunpack.c.l.b16 %v1340
    %v1441 = vunpack.c.l.b16 %v1341
    %v1442 = vunpack.c.l.b16 %v1342
    %v1443 = vunpack.c.l.b16 %v1343
    %v1444 = vunpack.c.l.b16 %v1344
    %v1445 = vunpack.c.l.b16 %v1345
    %v1446 = vunpack.c.l.b16 %v1346
    %v1447 = vunpack.c.l.b16 %v1347
    %v1448 = vunpack.c.l.b16 %v1348
    %v1449 = vunpack.c.l.b16 %v1349
    %v1450 = vunpack.c.l.b16 %v1350
    %v1451 = vunpack.c.l.b16 %v1351
    %v1452 = vunpack.c.l.b16 %v1352
    %v1453 = vunpack.c.l.b16 %v1353
    %v1454 = vunpack.c.l.b16 %v1354
    %v1455 = vunpack.c.l.b16 %v1355
    %v1456 = vunpack.c.l.b16 %v1356
    %v1457 = vunpack.c.l.b16 %v1357
    %v1458 = vunpack.c.l.b16 %v1358
    %v1459 = vunpack.c.l.b16 %v1359
    %v1460 = vunpack.c.l.b16 %v1360
    %v1461 = vunpack.c.l.b16 %v1361
    %v1462 = vunpack.c.l.b16 %v1362
    %v1463 = vunpack.c.l.b16 %v1363
    %v1464 = vunpack.c.l.b16 %v1364
    %v1465 = vunpack.c.l.b16 %v1365
    %v1466 = vunpack.c.l.b16 %v1366
    %v1467 = vunpack.c.l.b16 %v1367
    %v1468 = vunpack.c.l.b16 %v1368
    %v1469 = vunpack.c.l.b16 %v1369
    %v1470 = vunpack.c.l.b16 %v1370
    %v1471 = vunpack.c.l.b16 %v1371
    %v1472 = vpack.c.b16 %v1425, %v1424
    %v1473 = vpack.c.b16 %v1427, %v1426
    %v1474 = vpack.c.b16 %v1429, %v1428
    %v1475 = vpack.c.b16 %v1431, %v1430
    %v1476 = vpack.c.b16 %v1433, %v1432
    %v1477 = vpack.c.b16 %v1435, %v1434
    %v1478 = vpack.c.b16 %v1437, %v1436
    %v1479 = vpack.c.b16 %v1439, %v1438
    %v1480 = vpack.c.b16 %v1441, %v1440
    %v1481 = vpack.c.b16 %v1443, %v1442
    %v1482 = vpack.c.b16 %v1445, %v1444
    %v1483 = vpack.c.b16 %v1447, %v1446
    %v1484 = vpack.c.b16 %v1449, %v1448
    %v1485 = vpack.c.b16 %v1451, %v1450
    %v1486 = vpack.c.b16 %v1453, %v1452
    %v1487 = vpack.c.b16 %v1455, %v1454
    %v1488 = vpack.c.b16 %v1457, %v1456
    %v1489 = vpack.c.b16 %v1459, %v1458
    %v1490 = vpack.c.b16 %v1461, %v1460
    %v1491 = vpack.c.b16 %v1463, %v1462
    %v1492 = vpack.c.b16 %v1465, %v1464
    %v1493 = vpack.c.b16 %v1467, %v1466
    %v1494 = vpack.c.b16 %v1469, %v1468
    %v1495 = vpack.c.b16 %v1471, %v1470
    %1520 = vmatprep.subr.bf16.mxu0 0
    %1521 = vmatpush1.bf16.msra.mxu0 %v1479
    %1522 = vmatprep.subr.bf16.mxu0 0
    %1523 = vmatpush1.bf16.msra.mxu0 %v1478
    %1524 = vmatprep.subr.bf16.mxu0 0
    %1525 = vmatpush1.bf16.msra.mxu0 %v1477
    %1526 = vmatprep.subr.bf16.mxu0 0
    %1527 = vmatpush1.bf16.msra.mxu0 %v1476
    %1528 = vmatprep.subr.bf16.mxu0 0
    %1529 = vmatpush1.bf16.msra.mxu0 %v1475
    %1530 = vmatprep.subr.bf16.mxu0 0
    %1531 = vmatpush1.bf16.msra.mxu0 %v1474
    %1532 = vmatprep.subr.bf16.mxu0 0
    %1533 = vmatpush1.bf16.msra.mxu0 %v1473
    %1534 = vmatprep.subr.bf16.mxu0 0
    %1535 = vmatpush1.bf16.msra.mxu0 %v1472
    %1536 = vmatprep.subr.bf16.mxu0 0
    %1537 = vmatpush2.bf16.msra.mxu0 %v1487
    %1538 = vmatprep.subr.bf16.mxu0 0
    %1539 = vmatpush2.bf16.msra.mxu0 %v1486
    %1540 = vmatprep.subr.bf16.mxu0 0
    %1541 = vmatpush2.bf16.msra.mxu0 %v1485
    %1542 = vmatprep.subr.bf16.mxu0 0
    %1543 = vmatpush2.bf16.msra.mxu0 %v1484
    %1544 = vmatprep.subr.bf16.mxu0 0
    %1545 = vmatpush2.bf16.msra.mxu0 %v1483
    %1546 = vmatprep.subr.bf16.mxu0 0
    %1547 = vmatpush2.bf16.msra.mxu0 %v1482
    %1548 = vmatprep.subr.bf16.mxu0 0
    %1549 = vmatpush2.bf16.msra.mxu0 %v1481
    %1550 = vmatprep.subr.bf16.mxu0 0
    %1551 = vmatpush2.bf16.msra.mxu0 %v1480
    %1552 = vmatprep.mubr.bf16.mxu0 %v1373
    %1553 = vmatmul.mubr.bf16.gmra.mxu0 %v1372
    %v1554 = vpop.f32.mrf.mxu0
    %v1555 = vadd.f32 %v1375, %v1554
    %v1556 = vpop.f32.mrf.mxu0
    %v1557 = vpop.f32.mrf.mxu0
    %v1558 = vpop.f32.mrf.mxu0
    %1559 = vdwg.mxu0
    %1560 = vmatprep.subr.bf16.mxu0 0
    %1561 = vmatpush1.bf16.msra.mxu0 %v1495
    %1562 = vmatprep.subr.bf16.mxu0 0
    %1563 = vmatpush1.bf16.msra.mxu0 %v1494
    %1564 = vmatprep.subr.bf16.mxu0 0
    %1565 = vmatpush1.bf16.msra.mxu0 %v1493
    %1566 = vmatprep.subr.bf16.mxu0 0
    %1567 = vmatpush1.bf16.msra.mxu0 %v1492
    %1568 = vmatprep.subr.bf16.mxu0 0
    %1569 = vmatpush1.bf16.msra.mxu0 %v1491
    %1570 = vmatprep.subr.bf16.mxu0 0
    %1571 = vmatpush1.bf16.msra.mxu0 %v1490
    %1572 = vmatprep.subr.bf16.mxu0 0
    %1573 = vmatpush1.bf16.msra.mxu0 %v1489
    %1574 = vmatprep.subr.bf16.mxu0 0
    %1575 = vmatpush1.bf16.msra.mxu0 %v1488
    %1576 = vmatprep.subr.bf16.mxu0 0
    %1577 = vmatpush2.bf16.msra.mxu0 0
    %1578 = vmatprep.subr.bf16.mxu0 0
    %1579 = vmatpush2.bf16.msra.mxu0 0
    %1580 = vmatprep.subr.bf16.mxu0 0
    %1581 = vmatpush2.bf16.msra.mxu0 0
    %1582 = vmatprep.subr.bf16.mxu0 0
    %1583 = vmatpush2.bf16.msra.mxu0 0
    %1584 = vmatprep.subr.bf16.mxu0 0
    %1585 = vmatpush2.bf16.msra.mxu0 0
    %1586 = vmatprep.subr.bf16.mxu0 0
    %1587 = vmatpush2.bf16.msra.mxu0 0
    %1588 = vmatprep.subr.bf16.mxu0 0
    %1589 = vmatpush2.bf16.msra.mxu0 0
    %1590 = vmatprep.subr.bf16.mxu0 0
    %1591 = vmatpush2.bf16.msra.mxu0 0
    %1592 = vmatprep.mubr.bf16.mxu0 0
    %1593 = vmatmul.mubr.bf16.gmra.mxu0 %v1374
    %v1594 = vpop.f32.mrf.mxu0
    %v1595 = vadd.f32 %v1555, %v1594
    %v1596 = vpop.f32.mrf.mxu0
    %v1597 = vpop.f32.mrf.mxu0
    %v1598 = vpop.f32.mrf.mxu0
    %1599 = vdwg.mxu0
    %v1600 = vmax.f32 %v1595, 0.0
    %v1601 = vrot.slane %v1600, 4
    %v1602 = vadd.f32 %v1600, %v1601
    %v1603 = vrot.slane %v1602, 2
    %v1604 = vadd.f32 %v1602, %v1603
    %v1605 = vrot.slane %v1604, 1
    %v1606 = vadd.f32 %v1604, %v1605
    %v1607 = vld [vmem:[#allocation5 + $0x220] sm:$0xf]
    %v1608 = vld [vmem:[#allocation5 + $0x224] sm:$0xf]
    %v1609 = vld [vmem:[#allocation5 + $0x228] sm:$0xf]
    %v1610 = vld [vmem:[#allocation5 + $0x22c] sm:$0xf]
    %v1611 = vld [vmem:[#allocation5 + $0x230] sm:$0xf]
    %v1612 = vld [vmem:[#allocation5 + $0x234] sm:$0xf]
    %v1613 = vld [vmem:[#allocation5 + $0x238] sm:$0xf]
    %v1614 = vld [vmem:[#allocation5 + $0x23c] sm:$0xf]
    %v1615 = vld [vmem:[#allocation5 + $0x240] sm:$0xf]
    %v1616 = vld [vmem:[#allocation5 + $0x244] sm:$0xf]
    %v1617 = vld [vmem:[#allocation5 + $0x248] sm:$0xf]
    %v1618 = vld [vmem:[#allocation5 + $0x24c] sm:$0xf]
    %v1619 = vld [vmem:[#allocation5 + $0x250] sm:$0xf]
    %v1620 = vld [vmem:[#allocation5 + $0x254] sm:$0xf]
    %v1621 = vld [vmem:[#allocation5 + $0x258] sm:$0xf]
    %v1622 = vld [vmem:[#allocation5 + $0x25c] sm:$0xf]
    %v1623 = vpack.c.bf16 %v1606, %v1606
    %v1624 = vld [vmem:[#allocation7 + $0x20] ss:$0 sm:$0xff]
    %v1641 = vunpack.c.l.b16 %v1607
    %v1642 = vunpack.c.l.b16 %v1608
    %v1643 = vunpack.c.l.b16 %v1609
    %v1644 = vunpack.c.l.b16 %v1610
    %v1645 = vunpack.c.l.b16 %v1611
    %v1646 = vunpack.c.l.b16 %v1612
    %v1647 = vunpack.c.l.b16 %v1613
    %v1648 = vunpack.c.l.b16 %v1614
    %v1649 = vunpack.c.l.b16 %v1615
    %v1650 = vunpack.c.l.b16 %v1616
    %v1651 = vunpack.c.l.b16 %v1617
    %v1652 = vunpack.c.l.b16 %v1618
    %v1653 = vunpack.c.l.b16 %v1619
    %v1654 = vunpack.c.l.b16 %v1620
    %v1655 = vunpack.c.l.b16 %v1621
    %v1656 = vunpack.c.l.b16 %v1622
    %v1657 = vpack.c.b16 %v1642, %v1641
    %v1658 = vpack.c.b16 %v1644, %v1643
    %v1659 = vpack.c.b16 %v1646, %v1645
    %v1660 = vpack.c.b16 %v1648, %v1647
    %v1661 = vpack.c.b16 %v1650, %v1649
    %v1662 = vpack.c.b16 %v1652, %v1651
    %v1663 = vpack.c.b16 %v1654, %v1653
    %v1664 = vpack.c.b16 %v1656, %v1655
    %1673 = vmatprep.subr.bf16.mxu0 0
    %1674 = vmatpush1.bf16.msra.mxu0 %v1664
    %1675 = vmatprep.subr.bf16.mxu0 0
    %1676 = vmatpush1.bf16.msra.mxu0 %v1663
    %1677 = vmatprep.subr.bf16.mxu0 0
    %1678 = vmatpush1.bf16.msra.mxu0 %v1662
    %1679 = vmatprep.subr.bf16.mxu0 0
    %1680 = vmatpush1.bf16.msra.mxu0 %v1661
    %1681 = vmatprep.subr.bf16.mxu0 0
    %1682 = vmatpush1.bf16.msra.mxu0 %v1660
    %1683 = vmatprep.subr.bf16.mxu0 0
    %1684 = vmatpush1.bf16.msra.mxu0 %v1659
    %1685 = vmatprep.subr.bf16.mxu0 0
    %1686 = vmatpush1.bf16.msra.mxu0 %v1658
    %1687 = vmatprep.subr.bf16.mxu0 0
    %1688 = vmatpush1.bf16.msra.mxu0 %v1657
    %1689 = vmatprep.subr.bf16.mxu0 0
    %1690 = vmatpush2.bf16.msra.mxu0 0
    %1691 = vmatprep.subr.bf16.mxu0 0
    %1692 = vmatpush2.bf16.msra.mxu0 0
    %1693 = vmatprep.subr.bf16.mxu0 0
    %1694 = vmatpush2.bf16.msra.mxu0 0
    %1695 = vmatprep.subr.bf16.mxu0 0
    %1696 = vmatpush2.bf16.msra.mxu0 0
    %1697 = vmatprep.subr.bf16.mxu0 0
    %1698 = vmatpush2.bf16.msra.mxu0 0
    %1699 = vmatprep.subr.bf16.mxu0 0
    %1700 = vmatpush2.bf16.msra.mxu0 0
    %1701 = vmatprep.subr.bf16.mxu0 0
    %1702 = vmatpush2.bf16.msra.mxu0 0
    %1703 = vmatprep.subr.bf16.mxu0 0
    %1704 = vmatpush2.bf16.msra.mxu0 0
    %1705 = vmatprep.mubr.bf16.mxu0 0
    %1706 = vmatmul.mubr.bf16.gmra.mxu0 %v1623
    %v1707 = vpop.f32.mrf.mxu0
    %v1708 = vadd.f32 %v1624, %v1707
    %v1709 = vpop.f32.mrf.mxu0
    %v1710 = vpop.f32.mrf.mxu0
    %v1711 = vpop.f32.mrf.mxu0
    %1712 = vdwg.mxu0
    %v1713 = vmul.f32 %v1708, %v1708
    %vm1714 = vcmask 253952
    %v1715 = vsel %vm1714, %v1713, 0.0
    %1716 = vadd.xlane.f32.xlu0 %v1715
    %v1717 = vpop.xlane.xlu0 %1716
    %v1718 = vadd.f32 %v1717, 1e-08
    %v1719 = vrsqrt.pop %v1718
    %v1720 = vmul.f32 %v1708, %v1719
    %v1721 = vmul.f32 %v1194, %v1194
    %v1722 = vsel %vm1185, %v1721, 0.0
    %1723 = vadd.xlane.f32.xlu0 %v1722
    %v1724 = vpop.xlane.xlu0 %1723
    %v1725 = vadd.f32 %v1724, 1e-08
    %v1726 = vrsqrt.pop %v1725
    %v1727 = vmul.f32 %v1194, %v1726
    %v1728 = vmul.f32 %v1720, %v1727
    %v1729 = vsel %vm1714, %v1728, 0.0
    %1730 = vadd.xlane.f32.xlu0 %v1729
    %v1731 = vpop.xlane.xlu0 %1730
    %v1732 = vsub.f32 1.0, %v1731
    %v1733 = vmul.f32 %v1732, 0.5
    %1734 = vst.msk [vmem:[%s4] sm:$0xff] %vm806, %v960
    %1735 = vst.msk [vmem:[%s4 + $0x8] sm:$0xff] %vm806, %v961
    %v1736 = vlaneseq
    %v1737 = vshrl.u32 %v1736, 7
    %v1738 = vsub.s32 0, %v1737
    %v1739 = vrot.slane %v1733, %v1738
    %1740 = vst.msk [vmem:[%s4 + $0x10] sm:$0xff] %vm806, %v1739
    // Predicated region
    $region30: #{word2wave_forward.1} parent=1 // pred_check
      _
    $region31: #{word2wave_forward.1} parent=1 // pred_check_branch
      %1742 = sbr.rel (0) target = $region33
    $region32: #{word2wave_forward.1} parent=1 // pred_region
      _
    $region33: #{word2wave_forward.1} parent=1 // pred_fallthru
      _
    // Predicated region
    $region34: #{word2wave_forward.1} parent=1 // pred_check
      _
    $region35: #{word2wave_forward.1} parent=1 // pred_check_branch
      %1744 = sbr.rel (0) target = $region37
    $region36: #{word2wave_forward.1} parent=1 // pred_region
      _
    $region37: #{word2wave_forward.1} parent=1 // pred_fallthru
      _
    %1745 = vsyncpa [#allocation4], 1
    %1746 = vsyncpa [#allocation6], 1

</llo_original>
